<compile_context>
chip_gen: v7x
topology: tpu7x:2x2x1
jax: 0.10.0
libtpu: 0.0.40
codegen_flags: <defaults>
</compile_context>

<pallas_src>
import jax
import jax.numpy as jnp
from jax.experimental import pallas as pl
from jax.experimental.pallas import tpu as pltpu

D_IN = 768    # fixed by the module
D_HID = 192   # fixed by the module

_VMEM_LIMIT_BYTES = 32 * 1024 * 1024
_HAS_BUFFERED = hasattr(pl, "Buffered")


def se_block_kernel(x_ref, w1t_ref, b1_ref, w2t_ref, b2_ref, o_ref):
    # Linear(768 -> 192) + ReLU.  Feed the MXU directly from the x ref (cast
    # to the matmul dtype) so the f32 x tile is not held live across both
    # matmuls; f32 accumulation, bias/ReLU in f32 on the VPU.
    h = jnp.dot(x_ref[...].astype(w1t_ref.dtype), w1t_ref[...],
                preferred_element_type=jnp.float32)
    h = jnp.maximum(h + b1_ref[...], 0.0)            # (tm,192) + (1,192)

    # Linear(192 -> 768) + ReLU.
    out = jnp.dot(h.astype(w2t_ref.dtype), w2t_ref[...],
                  preferred_element_type=jnp.float32)
    out = jnp.maximum(out + b2_ref[...], 0.0)        # (tm,768) + (1,768)

    # Residual gating: re-read x from VMEM at the epilogue (short live range).
    o_ref[...] = (x_ref[...].astype(jnp.float32) * out).astype(o_ref.dtype)


def _round_up(n, m):
    return ((n + m - 1) // m) * m


def _num_tensorcores():
    """Best-effort TC-per-device count; only v7x has 2 (used for grid balance)."""
    try:
        kind = jax.devices()[0].device_kind.lower()
        if "v7" in kind:
            return 2
    except Exception:
        pass
    return 1


def _build_pallas_call(grid_m, tm_eff, out_dtype, use_buffered, cost):
    def const_spec(shape):
        # Constant index_map: operand is DMA'd once and stays VMEM-resident.
        if use_buffered:
            return pl.BlockSpec(shape, lambda i: (0,) * len(shape),
                                pipeline_mode=pl.Buffered(1))
        return pl.BlockSpec(shape, lambda i: (0,) * len(shape))

    return pl.pallas_call(
        se_block_kernel,
        out_shape=jax.ShapeDtypeStruct((grid_m * tm_eff, D_IN), out_dtype),
        grid_spec=pltpu.PrefetchScalarGridSpec(
            num_scalar_prefetch=0,
            grid=(grid_m,),
            in_specs=[
                pl.BlockSpec((tm_eff, D_IN), lambda i: (i, 0)),   # x tile
                const_spec((D_IN, D_HID)),                        # w1t
                const_spec((1, D_HID)),                           # b1
                const_spec((D_HID, D_IN)),                        # w2t
                const_spec((1, D_IN)),                            # b2
            ],
            out_specs=pl.BlockSpec((tm_eff, D_IN), lambda i: (i, 0)),
        ),
        compiler_params=pltpu.CompilerParams(
            dimension_semantics=("parallel",),
            vmem_limit_bytes=_VMEM_LIMIT_BYTES),
        cost_estimate=cost,
    )


def se_block(x, w1, b1, w2, b2, *, tm=1024, matmul_dtype=jnp.bfloat16):
    """x: (..., 768). w1: (192,768), b1: (192,), w2: (768,192), b2: (768,)."""
    orig_shape = x.shape
    orig_dtype = x.dtype
    x2d = x.reshape(-1, D_IN)
    M = x2d.shape[0]

    # ---- Balanced row tiling (padding capped at < 8 rows per grid step). ----
    grid_m = pl.cdiv(M, tm)
    tm_eff = _round_up(pl.cdiv(M, grid_m), 8)

    # Multi-TC (v7x) only: make sure the "parallel" axis splits evenly across
    # both TensorCores.  On single-TC v5e/v6e the grid is a serial loop, so
    # we do NOT split small problems there.
    ntc = _num_tensorcores()
    if ntc > 1:
        if grid_m == 1 and M > 8:
            grid_m = 2
        elif 2 < grid_m <= 8 and grid_m % 2 == 1:
            grid_m += 1
        tm_eff = _round_up(pl.cdiv(M, grid_m), 8)

    M_pad = grid_m * tm_eff
    if M_pad != M:
        x2d = jnp.pad(x2d, ((0, M_pad - M), (0, 0)))  # zero rows (gated later)

    # Pre-transpose + pre-cast weights (plain-JAX glue): kernel computes
    # x @ W^T directly in the compute dtype (bf16 default -> native MXU rate
    # and half the resident weight VMEM / weight DMA).
    w1t = w1.T.astype(matmul_dtype)                 # (768, 192)
    w2t = w2.T.astype(matmul_dtype)                 # (192, 768)
    b1r = b1.reshape(1, D_HID).astype(jnp.float32)  # (1, 192)
    b2r = b2.reshape(1, D_IN).astype(jnp.float32)   # (1, 768)

    x_itemsize = jnp.dtype(orig_dtype).itemsize
    w_itemsize = jnp.dtype(matmul_dtype).itemsize
    cost = pl.CostEstimate(
        flops=2 * M_pad * (D_IN * D_HID + D_HID * D_IN),
        transcendentals=0,
        bytes_accessed=(2 * M_pad * D_IN * x_itemsize
                        + (w1t.size + w2t.size) * w_itemsize
                        + (b1r.size + b2r.size) * 4),
    )

    args = (x2d, w1t, b1r, w2t, b2r)
    if _HAS_BUFFERED:
        try:
            out2d = _build_pallas_call(grid_m, tm_eff, orig_dtype, True, cost)(*args)
        except Exception:
            # pipeline_mode=Buffered(1) unsupported in this Pallas build —
            # fall back to default double-buffered resident specs.
            out2d = _build_pallas_call(grid_m, tm_eff, orig_dtype, False, cost)(*args)
    else:
        out2d = _build_pallas_call(grid_m, tm_eff, orig_dtype, False, cost)(*args)

    if M_pad != M:
        out2d = out2d[:M]
    return out2d.reshape(orig_shape)


def se_block_ref(x, w1, b1, w2, b2):
    """Pure-JAX reference mirroring the PyTorch forward (f32)."""
    h = jnp.maximum(x @ w1.T + b1, 0.0)
    out = jnp.maximum(h @ w2.T + b2, 0.0)
    return x * out


if __name__ == "__main__":
    key = jax.random.PRNGKey(0)
    kx, k1, k2, k3, k4, kr = jax.random.split(key, 6)

    # Small ViT-like token tensor: (batch=2, seq=8, dim=768) -> M=16 rows.
    x = jax.random.normal(kx, (2, 8, D_IN), dtype=jnp.float32)

    # Deterministic parameter init (nn.Linear-style uniform bounds).
    bound1 = 1.0 / jnp.sqrt(D_IN)
    bound2 = 1.0 / jnp.sqrt(D_HID)
    w1 = jax.random.uniform(k1, (D_HID, D_IN), jnp.float32, -bound1, bound1)
    b1 = jax.random.uniform(k2, (D_HID,), jnp.float32, -bound1, bound1)
    w2 = jax.random.uniform(k3, (D_IN, D_HID), jnp.float32, -bound2, bound2)
    b2 = jax.random.uniform(k4, (D_IN,), jnp.float32, -bound2, bound2)

    ref = se_block_ref(x, w1, b1, w2, b2)

    # 1) Exact path (f32 matmuls) — must match the torch-equivalent reference.
    out_f32 = se_block(x, w1, b1, w2, b2, matmul_dtype=jnp.float32)
    jax.block_until_ready(out_f32)
    assert out_f32.shape == x.shape and out_f32.dtype == x.dtype
    assert jnp.allclose(out_f32, ref, atol=1e-5, rtol=1e-5)

    # 2) Default fast path: bf16 MXU matmuls, f32 accumulate + epilogue.
    out_bf16 = se_block(x, w1, b1, w2, b2)
    jax.block_until_ready(out_bf16)
    assert out_bf16.shape == x.shape and out_bf16.dtype == x.dtype
    assert jnp.allclose(out_bf16, ref, atol=1e-1, rtol=1e-1)

    # 3) bf16 activations end-to-end (halves the dominant HBM streams).
    x_bf16 = x.astype(jnp.bfloat16)
    out_act_bf16 = se_block(x_bf16, w1, b1, w2, b2)
    jax.block_until_ready(out_act_bf16)
    assert out_act_bf16.shape == x.shape and out_act_bf16.dtype == jnp.bfloat16
    assert jnp.allclose(out_act_bf16.astype(jnp.float32), ref, atol=2e-1, rtol=2e-1)

    # 4) Ragged M (13 rows -> padded to 16) exercises the balanced-tile /
    #    zero-pad / slice path.
    x_rag = jax.random.normal(kr, (1, 13, D_IN), dtype=jnp.float32)
    ref_rag = se_block_ref(x_rag, w1, b1, w2, b2)
    out_rag = se_block(x_rag, w1, b1, w2, b2)
    jax.block_until_ready(out_rag)
    assert out_rag.shape == x_rag.shape and out_rag.dtype == x_rag.dtype
    assert jnp.allclose(out_rag, ref_rag, atol=1e-1, rtol=1e-1)

    print("KERNEL_OK")
</pallas_src>

<mosaic_0001>
module attributes {stable_mosaic.version = 11 : i64} {
  func.func @se_block_kernel(%arg0: i32, %arg1: memref<16x768xf32, #tpu.memory_space<vmem>>, %arg2: memref<768x192xf32, #tpu.memory_space<vmem>>, %arg3: memref<1x192xf32, #tpu.memory_space<vmem>>, %arg4: memref<192x768xf32, #tpu.memory_space<vmem>>, %arg5: memref<1x768xf32, #tpu.memory_space<vmem>>, %arg6: memref<16x768xf32, #tpu.memory_space<vmem>>) attributes {dimension_semantics = [#tpu.dimension_semantics<parallel>], iteration_bounds = array<i64: 1>, scalar_prefetch = 0 : i64, scratch_operands = 0 : i64, tpu.core_type = #tpu.core_type<tc>, window_params = [{transform_indices = @transform_0, window_bounds = array<i64: 16, 768>}, {pipeline_mode = #tpu.pipeline_mode<synchronous>, transform_indices = @transform_1, window_bounds = array<i64: 768, 192>}, {pipeline_mode = #tpu.pipeline_mode<synchronous>, transform_indices = @transform_2, window_bounds = array<i64: 1, 192>}, {pipeline_mode = #tpu.pipeline_mode<synchronous>, transform_indices = @transform_3, window_bounds = array<i64: 192, 768>}, {pipeline_mode = #tpu.pipeline_mode<synchronous>, transform_indices = @transform_4, window_bounds = array<i64: 1, 768>}, {transform_indices = @transform_5, window_bounds = array<i64: 16, 768>}]} {
    %c0 = arith.constant 0 : index
    %c0_0 = arith.constant 0 : index
    %0 = vector.load %arg1[%c0, %c0_0] : memref<16x768xf32, #tpu.memory_space<vmem>>, vector<16x768xf32>
    %c0_1 = arith.constant 0 : index
    %c0_2 = arith.constant 0 : index
    %1 = vector.load %arg2[%c0_1, %c0_2] : memref<768x192xf32, #tpu.memory_space<vmem>>, vector<768x192xf32>
    %cst = arith.constant dense<0.000000e+00> : vector<16x192xf32>
    %2 = tpu.matmul %0, %1, %cst {dimension_numbers = #tpu.dot_dimension_numbers<[1], [0], [0], [1], [0, 0, 1, 1], [], []>} : vector<16x768xf32>, vector<768x192xf32>, vector<16x192xf32> -> vector<16x192xf32>
    %c0_3 = arith.constant 0 : index
    %c0_4 = arith.constant 0 : index
    %3 = vector.load %arg3[%c0_3, %c0_4] : memref<1x192xf32, #tpu.memory_space<vmem>>, vector<1x192xf32>
    %4 = vector.broadcast %3 : vector<1x192xf32> to vector<16x192xf32>
    %5 = arith.addf %2, %4 : vector<16x192xf32>
    %cst_5 = arith.constant 0.000000e+00 : f32
    %6 = vector.broadcast %cst_5 : f32 to vector<16x192xf32>
    %7 = arith.maximumf %5, %6 : vector<16x192xf32>
    %c0_6 = arith.constant 0 : index
    %c0_7 = arith.constant 0 : index
    %8 = vector.load %arg4[%c0_6, %c0_7] : memref<192x768xf32, #tpu.memory_space<vmem>>, vector<192x768xf32>
    %cst_8 = arith.constant dense<0.000000e+00> : vector<16x768xf32>
    %9 = tpu.matmul %7, %8, %cst_8 {dimension_numbers = #tpu.dot_dimension_numbers<[1], [0], [0], [1], [0, 0, 1, 1], [], []>} : vector<16x192xf32>, vector<192x768xf32>, vector<16x768xf32> -> vector<16x768xf32>
    %c0_9 = arith.constant 0 : index
    %c0_10 = arith.constant 0 : index
    %10 = vector.load %arg5[%c0_9, %c0_10] : memref<1x768xf32, #tpu.memory_space<vmem>>, vector<1x768xf32>
    %11 = vector.broadcast %10 : vector<1x768xf32> to vector<16x768xf32>
    %12 = arith.addf %9, %11 : vector<16x768xf32>
    %cst_11 = arith.constant 0.000000e+00 : f32
    %13 = vector.broadcast %cst_11 : f32 to vector<16x768xf32>
    %14 = arith.maximumf %12, %13 : vector<16x768xf32>
    %c0_12 = arith.constant 0 : index
    %c0_13 = arith.constant 0 : index
    %15 = vector.load %arg1[%c0_12, %c0_13] : memref<16x768xf32, #tpu.memory_space<vmem>>, vector<16x768xf32>
    %16 = arith.mulf %15, %14 : vector<16x768xf32>
    %c0_14 = arith.constant 0 : index
    %c0_15 = arith.constant 0 : index
    %17 = vector.load %arg6[%c0_14, %c0_15] : memref<16x768xf32, #tpu.memory_space<vmem>>, vector<16x768xf32>
    tpu.vector_store %arg6[%c0_14, %c0_15], %16 {strides = array<i32>} : memref<16x768xf32, #tpu.memory_space<vmem>>, vector<16x768xf32>,
    return
  }
  func.func @transform_0(%arg0: i32) -> (i32, i32) {
    %c0_i32 = arith.constant 0 : i32
    %c0_i32_0 = arith.constant 0 : i32
    return %arg0, %c0_i32 : i32, i32
  }
  func.func @transform_1(%arg0: i32) -> (i32, i32) {
    %c0_i32 = arith.constant 0 : i32
    %c0_i32_0 = arith.constant 0 : i32
    %c0_i32_1 = arith.constant 0 : i32
    return %c0_i32, %c0_i32_0 : i32, i32
  }
  func.func @transform_2(%arg0: i32) -> (i32, i32) {
    %c0_i32 = arith.constant 0 : i32
    %c0_i32_0 = arith.constant 0 : i32
    %c0_i32_1 = arith.constant 0 : i32
    return %c0_i32, %c0_i32_0 : i32, i32
  }
  func.func @transform_3(%arg0: i32) -> (i32, i32) {
    %c0_i32 = arith.constant 0 : i32
    %c0_i32_0 = arith.constant 0 : i32
    %c0_i32_1 = arith.constant 0 : i32
    return %c0_i32, %c0_i32_0 : i32, i32
  }
  func.func @transform_4(%arg0: i32) -> (i32, i32) {
    %c0_i32 = arith.constant 0 : i32
    %c0_i32_0 = arith.constant 0 : i32
    %c0_i32_1 = arith.constant 0 : i32
    return %c0_i32, %c0_i32_0 : i32, i32
  }
  func.func @transform_5(%arg0: i32) -> (i32, i32) {
    %c0_i32 = arith.constant 0 : i32
    %c0_i32_0 = arith.constant 0 : i32
    return %arg0, %c0_i32 : i32, i32
  }
}

module attributes {stable_mosaic.version = 11 : i64} {
  func.func @se_block_kernel(%arg0: i32, %arg1: memref<16x768xf32, #tpu.memory_space<vmem>>, %arg2: memref<768x192xf32, #tpu.memory_space<vmem>>, %arg3: memref<1x192xf32, #tpu.memory_space<vmem>>, %arg4: memref<192x768xf32, #tpu.memory_space<vmem>>, %arg5: memref<1x768xf32, #tpu.memory_space<vmem>>, %arg6: memref<16x768xf32, #tpu.memory_space<vmem>>) attributes {dimension_semantics = [#tpu.dimension_semantics<parallel>], iteration_bounds = array<i64: 1>, scalar_prefetch = 0 : i64, scratch_operands = 0 : i64, tpu.core_type = #tpu.core_type<tc>, window_params = [{transform_indices = @transform_0, window_bounds = array<i64: 16, 768>}, {pipeline_mode = #tpu.pipeline_mode<synchronous>, transform_indices = @transform_1, window_bounds = array<i64: 768, 192>}, {pipeline_mode = #tpu.pipeline_mode<synchronous>, transform_indices = @transform_2, window_bounds = array<i64: 1, 192>}, {pipeline_mode = #tpu.pipeline_mode<synchronous>, transform_indices = @transform_3, window_bounds = array<i64: 192, 768>}, {pipeline_mode = #tpu.pipeline_mode<synchronous>, transform_indices = @transform_4, window_bounds = array<i64: 1, 768>}, {transform_indices = @transform_5, window_bounds = array<i64: 16, 768>}]} {
    %c0 = arith.constant 0 : index
    %c0_0 = arith.constant 0 : index
    %0 = vector.load %arg1[%c0, %c0_0] : memref<16x768xf32, #tpu.memory_space<vmem>>, vector<16x768xf32>
    %c0_1 = arith.constant 0 : index
    %c0_2 = arith.constant 0 : index
    %1 = vector.load %arg2[%c0_1, %c0_2] : memref<768x192xf32, #tpu.memory_space<vmem>>, vector<768x192xf32>
    %cst = arith.constant dense<0.000000e+00> : vector<16x192xf32>
    %2 = tpu.matmul %0, %1, %cst {dimension_numbers = #tpu.dot_dimension_numbers<[1], [0], [0], [1], [0, 0, 1, 1], [], []>} : vector<16x768xf32>, vector<768x192xf32>, vector<16x192xf32> -> vector<16x192xf32>
    %c0_3 = arith.constant 0 : index
    %c0_4 = arith.constant 0 : index
    %3 = vector.load %arg3[%c0_3, %c0_4] : memref<1x192xf32, #tpu.memory_space<vmem>>, vector<1x192xf32>
    %4 = vector.broadcast %3 : vector<1x192xf32> to vector<16x192xf32>
    %5 = arith.addf %2, %4 : vector<16x192xf32>
    %cst_5 = arith.constant 0.000000e+00 : f32
    %6 = vector.broadcast %cst_5 : f32 to vector<16x192xf32>
    %7 = arith.maximumf %5, %6 : vector<16x192xf32>
    %c0_6 = arith.constant 0 : index
    %c0_7 = arith.constant 0 : index
    %8 = vector.load %arg4[%c0_6, %c0_7] : memref<192x768xf32, #tpu.memory_space<vmem>>, vector<192x768xf32>
    %cst_8 = arith.constant dense<0.000000e+00> : vector<16x768xf32>
    %9 = tpu.matmul %7, %8, %cst_8 {dimension_numbers = #tpu.dot_dimension_numbers<[1], [0], [0], [1], [0, 0, 1, 1], [], []>} : vector<16x192xf32>, vector<192x768xf32>, vector<16x768xf32> -> vector<16x768xf32>
    %c0_9 = arith.constant 0 : index
    %c0_10 = arith.constant 0 : index
    %10 = vector.load %arg5[%c0_9, %c0_10] : memref<1x768xf32, #tpu.memory_space<vmem>>, vector<1x768xf32>
    %11 = vector.broadcast %10 : vector<1x768xf32> to vector<16x768xf32>
    %12 = arith.addf %9, %11 : vector<16x768xf32>
    %cst_11 = arith.constant 0.000000e+00 : f32
    %13 = vector.broadcast %cst_11 : f32 to vector<16x768xf32>
    %14 = arith.maximumf %12, %13 : vector<16x768xf32>
    %c0_12 = arith.constant 0 : index
    %c0_13 = arith.constant 0 : index
    %15 = vector.load %arg1[%c0_12, %c0_13] : memref<16x768xf32, #tpu.memory_space<vmem>>, vector<16x768xf32>
    %16 = arith.mulf %15, %14 : vector<16x768xf32>
    %c0_14 = arith.constant 0 : index
    %c0_15 = arith.constant 0 : index
    %17 = vector.load %arg6[%c0_14, %c0_15] : memref<16x768xf32, #tpu.memory_space<vmem>>, vector<16x768xf32>
    tpu.vector_store %arg6[%c0_14, %c0_15], %16 {strides = array<i32>} : memref<16x768xf32, #tpu.memory_space<vmem>>, vector<16x768xf32>,
    return
  }
  func.func @transform_0(%arg0: i32) -> (i32, i32) {
    %c0_i32 = arith.constant 0 : i32
    %c0_i32_0 = arith.constant 0 : i32
    return %arg0, %c0_i32 : i32, i32
  }
  func.func @transform_1(%arg0: i32) -> (i32, i32) {
    %c0_i32 = arith.constant 0 : i32
    %c0_i32_0 = arith.constant 0 : i32
    %c0_i32_1 = arith.constant 0 : i32
    return %c0_i32, %c0_i32_0 : i32, i32
  }
  func.func @transform_2(%arg0: i32) -> (i32, i32) {
    %c0_i32 = arith.constant 0 : i32
    %c0_i32_0 = arith.constant 0 : i32
    %c0_i32_1 = arith.constant 0 : i32
    return %c0_i32, %c0_i32_0 : i32, i32
  }
  func.func @transform_3(%arg0: i32) -> (i32, i32) {
    %c0_i32 = arith.constant 0 : i32
    %c0_i32_0 = arith.constant 0 : i32
    %c0_i32_1 = arith.constant 0 : i32
    return %c0_i32, %c0_i32_0 : i32, i32
  }
  func.func @transform_4(%arg0: i32) -> (i32, i32) {
    %c0_i32 = arith.constant 0 : i32
    %c0_i32_0 = arith.constant 0 : i32
    %c0_i32_1 = arith.constant 0 : i32
    return %c0_i32, %c0_i32_0 : i32, i32
  }
  func.func @transform_5(%arg0: i32) -> (i32, i32) {
    %c0_i32 = arith.constant 0 : i32
    %c0_i32_0 = arith.constant 0 : i32
    return %arg0, %c0_i32 : i32, i32
  }
}

</mosaic_0001>

<llo_original>
// kernel: tpu_custom_call.1
$region0: #{tpu_custom_call.1}
  #allocation0 [shape = 'u32[]', space=smem, size = 0x4, offset = 0x4, fixed_abs, tag = 'smem constant byte address 0x4 - core index']
  #allocation1 [shape = 'u32[144,128]{1,0:T(1,128)}', space=vmem, size = 0x12000, scoped, tag = 'internal scratch']
  %s0 = inlined_call_operand.vmem [shape: f32[16,768], index: 0, kind: input, shape index: {}]
  %s1 = inlined_call_operand.vmem [shape: f32[768,192], index: 1, kind: input, shape index: {}]
  %s2 = inlined_call_operand.vmem [shape: f32[1,192], index: 2, kind: input, shape index: {}]
  %s3 = inlined_call_operand.vmem [shape: f32[192,768], index: 3, kind: input, shape index: {}]
  %s4 = inlined_call_operand.vmem [shape: f32[1,768], index: 4, kind: input, shape index: {}]
  %s5 = inlined_call_operand.hbm [shape: f32[16,768], index: 5, kind: output, shape index: {}]
  %s6 = sld [smem:[#allocation0]]
  $region30: #{tpu_custom_call.1} parent=0
    _
  %s8 = ssub.s32 1, %s6
  %s9 = scalar_select 0, %s8, %s6
  $region1: #{tpu_custom_call.1} parent=0
    #allocation2 [shape = 'u8[49152]{0}', space=vmem, size = 0xc000, scoped, tag = 'output window, operand 0, single buffered']
    #allocation3 [shape = 's32[1]{0}', space=sflag, size = 0x4, scoped, tag = 'scoped memory for tpu_custom_call.1']
    %10 = vsyncpa [#allocation3], 0
    // Predicated region
    $region2: #{tpu_custom_call.1} parent=1 // pred_check
      _
    $region3: #{tpu_custom_call.1} parent=1 // pred_check_branch
      %12 = sbr.rel (0) target = $region5
    $region4: #{tpu_custom_call.1} parent=1 // pred_region
      _
    $region5: #{tpu_custom_call.1} parent=1 // pred_fallthru
      _
    // Predicated region
    $region6: #{tpu_custom_call.1} parent=1 // pred_check
      _
    $region7: #{tpu_custom_call.1} parent=1 // pred_check_branch
      %14 = sbr.rel (0) target = $region9
    $region8: #{tpu_custom_call.1} parent=1 // pred_region
      _
    $region9: #{tpu_custom_call.1} parent=1 // pred_fallthru
      _
    // Predicated region
    $region10: #{tpu_custom_call.1} parent=1 // pred_check
      _
    $region11: #{tpu_custom_call.1} parent=1 // pred_check_branch
      %16 = sbr.rel (0) target = $region13
    $region12: #{tpu_custom_call.1} parent=1 // pred_region
      _
    $region13: #{tpu_custom_call.1} parent=1 // pred_fallthru
      _
    // Predicated region
    $region14: #{tpu_custom_call.1} parent=1 // pred_check
      _
    $region15: #{tpu_custom_call.1} parent=1 // pred_check_branch
      %18 = sbr.rel (0) target = $region17
    $region16: #{tpu_custom_call.1} parent=1 // pred_region
      _
    $region17: #{tpu_custom_call.1} parent=1 // pred_fallthru
      _
    // Predicated region
    $region18: #{tpu_custom_call.1} parent=1 // pred_check
      _
    $region19: #{tpu_custom_call.1} parent=1 // pred_check_branch
      %20 = sbr.rel (0) target = $region21
    $region20: #{tpu_custom_call.1} parent=1 // pred_region
      _
    $region21: #{tpu_custom_call.1} parent=1 // pred_fallthru
      _
    %v21 = vld [vmem:[%s0] sm:$0xff]
    %v22 = vld [vmem:[%s0 + $0x8] sm:$0xff]
    %v23 = vld [vmem:[%s0 + $0x10] sm:$0xff]
    %v24 = vld [vmem:[%s0 + $0x18] sm:$0xff]
    %v25 = vld [vmem:[%s0 + $0x20] sm:$0xff]
    %v26 = vld [vmem:[%s0 + $0x28] sm:$0xff]
    %v27 = vld [vmem:[%s0 + $0x30] sm:$0xff]
    %v28 = vld [vmem:[%s0 + $0x38] sm:$0xff]
    %v29 = vld [vmem:[%s0 + $0x40] sm:$0xff]
    %v30 = vld [vmem:[%s0 + $0x48] sm:$0xff]
    %v31 = vld [vmem:[%s0 + $0x50] sm:$0xff]
    %v32 = vld [vmem:[%s0 + $0x58] sm:$0xff]
    %v33 = vld [vmem:[%s1] sm:$0xff]
    %v34 = vld [vmem:[%s1 + $0x8] sm:$0xff]
    %v35 = vld [vmem:[%s1 + $0x10] sm:$0xff]
    %v36 = vld [vmem:[%s1 + $0x18] sm:$0xff]
    %v37 = vld [vmem:[%s1 + $0x20] sm:$0xff]
    %v38 = vld [vmem:[%s1 + $0x28] sm:$0xff]
    %v39 = vld [vmem:[%s1 + $0x30] sm:$0xff]
    %v40 = vld [vmem:[%s1 + $0x38] sm:$0xff]
    %v41 = vld [vmem:[%s1 + $0x40] sm:$0xff]
    %v42 = vld [vmem:[%s1 + $0x48] sm:$0xff]
    %v43 = vld [vmem:[%s1 + $0x50] sm:$0xff]
    %v44 = vld [vmem:[%s1 + $0x58] sm:$0xff]
    %v45 = vld [vmem:[%s1 + $0x60] sm:$0xff]
    %v46 = vld [vmem:[%s1 + $0x68] sm:$0xff]
    %v47 = vld [vmem:[%s1 + $0x70] sm:$0xff]
    %v48 = vld [vmem:[%s1 + $0x78] sm:$0xff]
    %v49 = vld [vmem:[%s1 + $0x80] sm:$0xff]
    %v50 = vld [vmem:[%s1 + $0x88] sm:$0xff]
    %v51 = vld [vmem:[%s1 + $0x90] sm:$0xff]
    %v52 = vld [vmem:[%s1 + $0x98] sm:$0xff]
    %v53 = vld [vmem:[%s1 + $0xa0] sm:$0xff]
    %v54 = vld [vmem:[%s1 + $0xa8] sm:$0xff]
    %v55 = vld [vmem:[%s1 + $0xb0] sm:$0xff]
    %v56 = vld [vmem:[%s1 + $0xb8] sm:$0xff]
    %v57 = vld [vmem:[%s1 + $0xc0] sm:$0xff]
    %v58 = vld [vmem:[%s1 + $0xc8] sm:$0xff]
    %v59 = vld [vmem:[%s1 + $0xd0] sm:$0xff]
    %v60 = vld [vmem:[%s1 + $0xd8] sm:$0xff]
    %v61 = vld [vmem:[%s1 + $0xe0] sm:$0xff]
    %v62 = vld [vmem:[%s1 + $0xe8] sm:$0xff]
    %v63 = vld [vmem:[%s1 + $0xf0] sm:$0xff]
    %v64 = vld [vmem:[%s1 + $0xf8] sm:$0xff]
    %v65 = vld [vmem:[%s1 + $0x100] sm:$0xff]
    %v66 = vld [vmem:[%s1 + $0x108] sm:$0xff]
    %v67 = vld [vmem:[%s1 + $0x110] sm:$0xff]
    %v68 = vld [vmem:[%s1 + $0x118] sm:$0xff]
    %v69 = vld [vmem:[%s1 + $0x120] sm:$0xff]
    %v70 = vld [vmem:[%s1 + $0x128] sm:$0xff]
    %v71 = vld [vmem:[%s1 + $0x130] sm:$0xff]
    %v72 = vld [vmem:[%s1 + $0x138] sm:$0xff]
    %v73 = vld [vmem:[%s1 + $0x140] sm:$0xff]
    %v74 = vld [vmem:[%s1 + $0x148] sm:$0xff]
    %v75 = vld [vmem:[%s1 + $0x150] sm:$0xff]
    %v76 = vld [vmem:[%s1 + $0x158] sm:$0xff]
    %v77 = vld [vmem:[%s1 + $0x160] sm:$0xff]
    %v78 = vld [vmem:[%s1 + $0x168] sm:$0xff]
    %v79 = vld [vmem:[%s1 + $0x170] sm:$0xff]
    %v80 = vld [vmem:[%s1 + $0x178] sm:$0xff]
    %v81 = vld [vmem:[%s1 + $0x180] sm:$0xff]
    %v82 = vld [vmem:[%s1 + $0x188] sm:$0xff]
    %v83 = vld [vmem:[%s1 + $0x190] sm:$0xff]
    %v84 = vld [vmem:[%s1 + $0x198] sm:$0xff]
    %v85 = vld [vmem:[%s1 + $0x1a0] sm:$0xff]
    %v86 = vld [vmem:[%s1 + $0x1a8] sm:$0xff]
    %v87 = vld [vmem:[%s1 + $0x1b0] sm:$0xff]
    %v88 = vld [vmem:[%s1 + $0x1b8] sm:$0xff]
    %v89 = vld [vmem:[%s1 + $0x1c0] sm:$0xff]
    %v90 = vld [vmem:[%s1 + $0x1c8] sm:$0xff]
    %v91 = vld [vmem:[%s1 + $0x1d0] sm:$0xff]
    %v92 = vld [vmem:[%s1 + $0x1d8] sm:$0xff]
    %v93 = vld [vmem:[%s1 + $0x1e0] sm:$0xff]
    %v94 = vld [vmem:[%s1 + $0x1e8] sm:$0xff]
    %v95 = vld [vmem:[%s1 + $0x1f0] sm:$0xff]
    %v96 = vld [vmem:[%s1 + $0x1f8] sm:$0xff]
    %v97 = vld [vmem:[%s1 + $0x200] sm:$0xff]
    %v98 = vld [vmem:[%s1 + $0x208] sm:$0xff]
    %v99 = vld [vmem:[%s1 + $0x210] sm:$0xff]
    %v100 = vld [vmem:[%s1 + $0x218] sm:$0xff]
    %v101 = vld [vmem:[%s1 + $0x220] sm:$0xff]
    %v102 = vld [vmem:[%s1 + $0x228] sm:$0xff]
    %v103 = vld [vmem:[%s1 + $0x230] sm:$0xff]
    %v104 = vld [vmem:[%s1 + $0x238] sm:$0xff]
    %v105 = vld [vmem:[%s1 + $0x240] sm:$0xff]
    %v106 = vld [vmem:[%s1 + $0x248] sm:$0xff]
    %v107 = vld [vmem:[%s1 + $0x250] sm:$0xff]
    %v108 = vld [vmem:[%s1 + $0x258] sm:$0xff]
    %v109 = vld [vmem:[%s1 + $0x260] sm:$0xff]
    %v110 = vld [vmem:[%s1 + $0x268] sm:$0xff]
    %v111 = vld [vmem:[%s1 + $0x270] sm:$0xff]
    %v112 = vld [vmem:[%s1 + $0x278] sm:$0xff]
    %v113 = vld [vmem:[%s1 + $0x280] sm:$0xff]
    %v114 = vld [vmem:[%s1 + $0x288] sm:$0xff]
    %v115 = vld [vmem:[%s1 + $0x290] sm:$0xff]
    %v116 = vld [vmem:[%s1 + $0x298] sm:$0xff]
    %v117 = vld [vmem:[%s1 + $0x2a0] sm:$0xff]
    %v118 = vld [vmem:[%s1 + $0x2a8] sm:$0xff]
    %v119 = vld [vmem:[%s1 + $0x2b0] sm:$0xff]
    %v120 = vld [vmem:[%s1 + $0x2b8] sm:$0xff]
    %v121 = vld [vmem:[%s1 + $0x2c0] sm:$0xff]
    %v122 = vld [vmem:[%s1 + $0x2c8] sm:$0xff]
    %v123 = vld [vmem:[%s1 + $0x2d0] sm:$0xff]
    %v124 = vld [vmem:[%s1 + $0x2d8] sm:$0xff]
    %v125 = vld [vmem:[%s1 + $0x2e0] sm:$0xff]
    %v126 = vld [vmem:[%s1 + $0x2e8] sm:$0xff]
    %v127 = vld [vmem:[%s1 + $0x2f0] sm:$0xff]
    %v128 = vld [vmem:[%s1 + $0x2f8] sm:$0xff]
    %v129 = vld [vmem:[%s1 + $0x300] sm:$0xff]
    %v130 = vld [vmem:[%s1 + $0x308] sm:$0xff]
    %v131 = vld [vmem:[%s1 + $0x310] sm:$0xff]
    %v132 = vld [vmem:[%s1 + $0x318] sm:$0xff]
    %v133 = vld [vmem:[%s1 + $0x320] sm:$0xff]
    %v134 = vld [vmem:[%s1 + $0x328] sm:$0xff]
    %v135 = vld [vmem:[%s1 + $0x330] sm:$0xff]
    %v136 = vld [vmem:[%s1 + $0x338] sm:$0xff]
    %v137 = vld [vmem:[%s1 + $0x340] sm:$0xff]
    %v138 = vld [vmem:[%s1 + $0x348] sm:$0xff]
    %v139 = vld [vmem:[%s1 + $0x350] sm:$0xff]
    %v140 = vld [vmem:[%s1 + $0x358] sm:$0xff]
    %v141 = vld [vmem:[%s1 + $0x360] sm:$0xff]
    %v142 = vld [vmem:[%s1 + $0x368] sm:$0xff]
    %v143 = vld [vmem:[%s1 + $0x370] sm:$0xff]
    %v144 = vld [vmem:[%s1 + $0x378] sm:$0xff]
    %v145 = vld [vmem:[%s1 + $0x380] sm:$0xff]
    %v146 = vld [vmem:[%s1 + $0x388] sm:$0xff]
    %v147 = vld [vmem:[%s1 + $0x390] sm:$0xff]
    %v148 = vld [vmem:[%s1 + $0x398] sm:$0xff]
    %v149 = vld [vmem:[%s1 + $0x3a0] sm:$0xff]
    %v150 = vld [vmem:[%s1 + $0x3a8] sm:$0xff]
    %v151 = vld [vmem:[%s1 + $0x3b0] sm:$0xff]
    %v152 = vld [vmem:[%s1 + $0x3b8] sm:$0xff]
    %v153 = vld [vmem:[%s1 + $0x3c0] sm:$0xff]
    %v154 = vld [vmem:[%s1 + $0x3c8] sm:$0xff]
    %v155 = vld [vmem:[%s1 + $0x3d0] sm:$0xff]
    %v156 = vld [vmem:[%s1 + $0x3d8] sm:$0xff]
    %v157 = vld [vmem:[%s1 + $0x3e0] sm:$0xff]
    %v158 = vld [vmem:[%s1 + $0x3e8] sm:$0xff]
    %v159 = vld [vmem:[%s1 + $0x3f0] sm:$0xff]
    %v160 = vld [vmem:[%s1 + $0x3f8] sm:$0xff]
    %v161 = vld [vmem:[%s1 + $0x400] sm:$0xff]
    %v162 = vld [vmem:[%s1 + $0x408] sm:$0xff]
    %v163 = vld [vmem:[%s1 + $0x410] sm:$0xff]
    %v164 = vld [vmem:[%s1 + $0x418] sm:$0xff]
    %v165 = vld [vmem:[%s1 + $0x420] sm:$0xff]
    %v166 = vld [vmem:[%s1 + $0x428] sm:$0xff]
    %v167 = vld [vmem:[%s1 + $0x430] sm:$0xff]
    %v168 = vld [vmem:[%s1 + $0x438] sm:$0xff]
    %v169 = vld [vmem:[%s1 + $0x440] sm:$0xff]
    %v170 = vld [vmem:[%s1 + $0x448] sm:$0xff]
    %v171 = vld [vmem:[%s1 + $0x450] sm:$0xff]
    %v172 = vld [vmem:[%s1 + $0x458] sm:$0xff]
    %v173 = vld [vmem:[%s1 + $0x460] sm:$0xff]
    %v174 = vld [vmem:[%s1 + $0x468] sm:$0xff]
    %v175 = vld [vmem:[%s1 + $0x470] sm:$0xff]
    %v176 = vld [vmem:[%s1 + $0x478] sm:$0xff]
    %v177 = vld [vmem:[%s1 + $0x480] sm:$0xff]
    %v178 = vld [vmem:[%s1 + $0x488] sm:$0xff]
    %v179 = vld [vmem:[%s1 + $0x490] sm:$0xff]
    %v180 = vld [vmem:[%s1 + $0x498] sm:$0xff]
    %v181 = vld [vmem:[%s1 + $0x4a0] sm:$0xff]
    %v182 = vld [vmem:[%s1 + $0x4a8] sm:$0xff]
    %v183 = vld [vmem:[%s1 + $0x4b0] sm:$0xff]
    %v184 = vld [vmem:[%s1 + $0x4b8] sm:$0xff]
    %v185 = vld [vmem:[%s1 + $0x4c0] sm:$0xff]
    %v186 = vld [vmem:[%s1 + $0x4c8] sm:$0xff]
    %v187 = vld [vmem:[%s1 + $0x4d0] sm:$0xff]
    %v188 = vld [vmem:[%s1 + $0x4d8] sm:$0xff]
    %v189 = vld [vmem:[%s1 + $0x4e0] sm:$0xff]
    %v190 = vld [vmem:[%s1 + $0x4e8] sm:$0xff]
    %v191 = vld [vmem:[%s1 + $0x4f0] sm:$0xff]
    %v192 = vld [vmem:[%s1 + $0x4f8] sm:$0xff]
    %v193 = vld [vmem:[%s1 + $0x500] sm:$0xff]
    %v194 = vld [vmem:[%s1 + $0x508] sm:$0xff]
    %v195 = vld [vmem:[%s1 + $0x510] sm:$0xff]
    %v196 = vld [vmem:[%s1 + $0x518] sm:$0xff]
    %v197 = vld [vmem:[%s1 + $0x520] sm:$0xff]
    %v198 = vld [vmem:[%s1 + $0x528] sm:$0xff]
    %v199 = vld [vmem:[%s1 + $0x530] sm:$0xff]
    %v200 = vld [vmem:[%s1 + $0x538] sm:$0xff]
    %v201 = vld [vmem:[%s1 + $0x540] sm:$0xff]
    %v202 = vld [vmem:[%s1 + $0x548] sm:$0xff]
    %v203 = vld [vmem:[%s1 + $0x550] sm:$0xff]
    %v204 = vld [vmem:[%s1 + $0x558] sm:$0xff]
    %v205 = vld [vmem:[%s1 + $0x560] sm:$0xff]
    %v206 = vld [vmem:[%s1 + $0x568] sm:$0xff]
    %v207 = vld [vmem:[%s1 + $0x570] sm:$0xff]
    %v208 = vld [vmem:[%s1 + $0x578] sm:$0xff]
    %v209 = vld [vmem:[%s1 + $0x580] sm:$0xff]
    %v210 = vld [vmem:[%s1 + $0x588] sm:$0xff]
    %v211 = vld [vmem:[%s1 + $0x590] sm:$0xff]
    %v212 = vld [vmem:[%s1 + $0x598] sm:$0xff]
    %v213 = vld [vmem:[%s1 + $0x5a0] sm:$0xff]
    %v214 = vld [vmem:[%s1 + $0x5a8] sm:$0xff]
    %v215 = vld [vmem:[%s1 + $0x5b0] sm:$0xff]
    %v216 = vld [vmem:[%s1 + $0x5b8] sm:$0xff]
    %v217 = vld [vmem:[%s1 + $0x5c0] sm:$0xff]
    %v218 = vld [vmem:[%s1 + $0x5c8] sm:$0xff]
    %v219 = vld [vmem:[%s1 + $0x5d0] sm:$0xff]
    %v220 = vld [vmem:[%s1 + $0x5d8] sm:$0xff]
    %v221 = vld [vmem:[%s1 + $0x5e0] sm:$0xff]
    %v222 = vld [vmem:[%s1 + $0x5e8] sm:$0xff]
    %v223 = vld [vmem:[%s1 + $0x5f0] sm:$0xff]
    %v224 = vld [vmem:[%s1 + $0x5f8] sm:$0xff]
    %v225 = vld [vmem:[%s2] sm:$0x3]
    %v227 = vlaneseq
    %v228 = vshrl.u32 %v227, 7
    %v229 = vsub.s32 0, %v228
    %v230 = vrot.slane %v225, %v229
    %v231 = vlaneseq
    %v232 = vshrl.u32 %v231, 7
    %v233 = vsub.s32 1, %v232
    %v234 = vrot.slane %v225, %v233
    %237 = vmatprep.subr.mxu0 %v34
    %238 = vmatpush1.msra.mxu0 %v33
    %239 = vmatprep.subr.mxu0 %v36
    %240 = vmatpush1.msra.mxu0 %v35
    %241 = vmatprep.subr.mxu0 %v38
    %242 = vmatpush1.msra.mxu0 %v37
    %243 = vmatprep.subr.mxu0 %v40
    %244 = vmatpush1.msra.mxu0 %v39
    %245 = vmatprep.subr.mxu0 %v42
    %246 = vmatpush1.msra.mxu0 %v41
    %247 = vmatprep.subr.mxu0 %v44
    %248 = vmatpush1.msra.mxu0 %v43
    %249 = vmatprep.subr.mxu0 %v46
    %250 = vmatpush1.msra.mxu0 %v45
    %251 = vmatprep.subr.mxu0 %v48
    %252 = vmatpush1.msra.mxu0 %v47
    %253 = vmatprep.subr.mxu0 %v50
    %254 = vmatpush1.msra.mxu0 %v49
    %255 = vmatprep.subr.mxu0 %v52
    %256 = vmatpush1.msra.mxu0 %v51
    %257 = vmatprep.subr.mxu0 %v54
    %258 = vmatpush1.msra.mxu0 %v53
    %259 = vmatprep.subr.mxu0 %v56
    %260 = vmatpush1.msra.mxu0 %v55
    %261 = vmatprep.subr.mxu0 %v58
    %262 = vmatpush1.msra.mxu0 %v57
    %263 = vmatprep.subr.mxu0 %v60
    %264 = vmatpush1.msra.mxu0 %v59
    %265 = vmatprep.subr.mxu0 %v62
    %266 = vmatpush1.msra.mxu0 %v61
    %267 = vmatprep.subr.mxu0 %v64
    %268 = vmatpush1.msra.mxu0 %v63
    %269 = vmatprep.subr.mxu0 %v66
    %270 = vmatpush1.msra.mxu0 %v65
    %271 = vmatprep.subr.mxu0 %v68
    %272 = vmatpush1.msra.mxu0 %v67
    %273 = vmatprep.subr.mxu0 %v70
    %274 = vmatpush1.msra.mxu0 %v69
    %275 = vmatprep.subr.mxu0 %v72
    %276 = vmatpush1.msra.mxu0 %v71
    %277 = vmatprep.subr.mxu0 %v74
    %278 = vmatpush1.msra.mxu0 %v73
    %279 = vmatprep.subr.mxu0 %v76
    %280 = vmatpush1.msra.mxu0 %v75
    %281 = vmatprep.subr.mxu0 %v78
    %282 = vmatpush1.msra.mxu0 %v77
    %283 = vmatprep.subr.mxu0 %v80
    %284 = vmatpush1.msra.mxu0 %v79
    %285 = vmatprep.subr.mxu0 %v82
    %286 = vmatpush1.msra.mxu0 %v81
    %287 = vmatprep.subr.mxu0 %v84
    %288 = vmatpush1.msra.mxu0 %v83
    %289 = vmatprep.subr.mxu0 %v86
    %290 = vmatpush1.msra.mxu0 %v85
    %291 = vmatprep.subr.mxu0 %v88
    %292 = vmatpush1.msra.mxu0 %v87
    %293 = vmatprep.subr.mxu0 %v90
    %294 = vmatpush1.msra.mxu0 %v89
    %295 = vmatprep.subr.mxu0 %v92
    %296 = vmatpush1.msra.mxu0 %v91
    %297 = vmatprep.subr.mxu0 %v94
    %298 = vmatpush1.msra.mxu0 %v93
    %299 = vmatprep.subr.mxu0 %v96
    %300 = vmatpush1.msra.mxu0 %v95
    %301 = vmatprep.mubr.f32.mxu0 %v22
    %302 = vmatmul.mubr.f32.gmra.mrb[0].mxu0 %v21
    %v303 = vpop.f32.mrb[0].mxu0
    %v304 = vadd.f32 %v230, %v303
    %v305 = vpop.f32.mrb[0].mxu0
    %v306 = vadd.f32 %v234, %v305
    %307 = vmatprep.mubr.f32.mxu0 %v28
    %308 = vmatmul.mubr.f32.gmra.mrb[0].mxu0 %v27
    %v309 = vpop.f32.mrb[0].mxu0
    %v310 = vadd.f32 %v230, %v309
    %v311 = vpop.f32.mrb[0].mxu0
    %v312 = vadd.f32 %v234, %v311
    %313 = vdwg.mxu0
    %314 = vmatprep.subr.mxu0 %v98
    %315 = vmatpush1.msra.mxu0 %v97
    %316 = vmatprep.subr.mxu0 %v100
    %317 = vmatpush1.msra.mxu0 %v99
    %318 = vmatprep.subr.mxu0 %v102
    %319 = vmatpush1.msra.mxu0 %v101
    %320 = vmatprep.subr.mxu0 %v104
    %321 = vmatpush1.msra.mxu0 %v103
    %322 = vmatprep.subr.mxu0 %v106
    %323 = vmatpush1.msra.mxu0 %v105
    %324 = vmatprep.subr.mxu0 %v108
    %325 = vmatpush1.msra.mxu0 %v107
    %326 = vmatprep.subr.mxu0 %v110
    %327 = vmatpush1.msra.mxu0 %v109
    %328 = vmatprep.subr.mxu0 %v112
    %329 = vmatpush1.msra.mxu0 %v111
    %330 = vmatprep.subr.mxu0 %v114
    %331 = vmatpush1.msra.mxu0 %v113
    %332 = vmatprep.subr.mxu0 %v116
    %333 = vmatpush1.msra.mxu0 %v115
    %334 = vmatprep.subr.mxu0 %v118
    %335 = vmatpush1.msra.mxu0 %v117
    %336 = vmatprep.subr.mxu0 %v120
    %337 = vmatpush1.msra.mxu0 %v119
    %338 = vmatprep.subr.mxu0 %v122
    %339 = vmatpush1.msra.mxu0 %v121
    %340 = vmatprep.subr.mxu0 %v124
    %341 = vmatpush1.msra.mxu0 %v123
    %342 = vmatprep.subr.mxu0 %v126
    %343 = vmatpush1.msra.mxu0 %v125
    %344 = vmatprep.subr.mxu0 %v128
    %345 = vmatpush1.msra.mxu0 %v127
    %346 = vmatprep.subr.mxu0 %v130
    %347 = vmatpush1.msra.mxu0 %v129
    %348 = vmatprep.subr.mxu0 %v132
    %349 = vmatpush1.msra.mxu0 %v131
    %350 = vmatprep.subr.mxu0 %v134
    %351 = vmatpush1.msra.mxu0 %v133
    %352 = vmatprep.subr.mxu0 %v136
    %353 = vmatpush1.msra.mxu0 %v135
    %354 = vmatprep.subr.mxu0 %v138
    %355 = vmatpush1.msra.mxu0 %v137
    %356 = vmatprep.subr.mxu0 %v140
    %357 = vmatpush1.msra.mxu0 %v139
    %358 = vmatprep.subr.mxu0 %v142
    %359 = vmatpush1.msra.mxu0 %v141
    %360 = vmatprep.subr.mxu0 %v144
    %361 = vmatpush1.msra.mxu0 %v143
    %362 = vmatprep.subr.mxu0 %v146
    %363 = vmatpush1.msra.mxu0 %v145
    %364 = vmatprep.subr.mxu0 %v148
    %365 = vmatpush1.msra.mxu0 %v147
    %366 = vmatprep.subr.mxu0 %v150
    %367 = vmatpush1.msra.mxu0 %v149
    %368 = vmatprep.subr.mxu0 %v152
    %369 = vmatpush1.msra.mxu0 %v151
    %370 = vmatprep.subr.mxu0 %v154
    %371 = vmatpush1.msra.mxu0 %v153
    %372 = vmatprep.subr.mxu0 %v156
    %373 = vmatpush1.msra.mxu0 %v155
    %374 = vmatprep.subr.mxu0 %v158
    %375 = vmatpush1.msra.mxu0 %v157
    %376 = vmatprep.subr.mxu0 %v160
    %377 = vmatpush1.msra.mxu0 %v159
    %378 = vmatprep.mubr.f32.mxu0 %v24
    %379 = vmatmul.mubr.f32.gmra.mrb[0].mxu0 %v23
    %v380 = vpop.f32.mrb[0].mxu0
    %v381 = vadd.f32 %v304, %v380
    %v382 = vpop.f32.mrb[0].mxu0
    %v383 = vadd.f32 %v306, %v382
    %384 = vmatprep.mubr.f32.mxu0 %v30
    %385 = vmatmul.mubr.f32.gmra.mrb[0].mxu0 %v29
    %v386 = vpop.f32.mrb[0].mxu0
    %v387 = vadd.f32 %v310, %v386
    %v388 = vpop.f32.mrb[0].mxu0
    %v389 = vadd.f32 %v312, %v388
    %390 = vdwg.mxu0
    %391 = vmatprep.subr.mxu0 %v162
    %392 = vmatpush1.msra.mxu0 %v161
    %393 = vmatprep.subr.mxu0 %v164
    %394 = vmatpush1.msra.mxu0 %v163
    %395 = vmatprep.subr.mxu0 %v166
    %396 = vmatpush1.msra.mxu0 %v165
    %397 = vmatprep.subr.mxu0 %v168
    %398 = vmatpush1.msra.mxu0 %v167
    %399 = vmatprep.subr.mxu0 %v170
    %400 = vmatpush1.msra.mxu0 %v169
    %401 = vmatprep.subr.mxu0 %v172
    %402 = vmatpush1.msra.mxu0 %v171
    %403 = vmatprep.subr.mxu0 %v174
    %404 = vmatpush1.msra.mxu0 %v173
    %405 = vmatprep.subr.mxu0 %v176
    %406 = vmatpush1.msra.mxu0 %v175
    %407 = vmatprep.subr.mxu0 %v178
    %408 = vmatpush1.msra.mxu0 %v177
    %409 = vmatprep.subr.mxu0 %v180
    %410 = vmatpush1.msra.mxu0 %v179
    %411 = vmatprep.subr.mxu0 %v182
    %412 = vmatpush1.msra.mxu0 %v181
    %413 = vmatprep.subr.mxu0 %v184
    %414 = vmatpush1.msra.mxu0 %v183
    %415 = vmatprep.subr.mxu0 %v186
    %416 = vmatpush1.msra.mxu0 %v185
    %417 = vmatprep.subr.mxu0 %v188
    %418 = vmatpush1.msra.mxu0 %v187
    %419 = vmatprep.subr.mxu0 %v190
    %420 = vmatpush1.msra.mxu0 %v189
    %421 = vmatprep.subr.mxu0 %v192
    %422 = vmatpush1.msra.mxu0 %v191
    %423 = vmatprep.subr.mxu0 %v194
    %424 = vmatpush1.msra.mxu0 %v193
    %425 = vmatprep.subr.mxu0 %v196
    %426 = vmatpush1.msra.mxu0 %v195
    %427 = vmatprep.subr.mxu0 %v198
    %428 = vmatpush1.msra.mxu0 %v197
    %429 = vmatprep.subr.mxu0 %v200
    %430 = vmatpush1.msra.mxu0 %v199
    %431 = vmatprep.subr.mxu0 %v202
    %432 = vmatpush1.msra.mxu0 %v201
    %433 = vmatprep.subr.mxu0 %v204
    %434 = vmatpush1.msra.mxu0 %v203
    %435 = vmatprep.subr.mxu0 %v206
    %436 = vmatpush1.msra.mxu0 %v205
    %437 = vmatprep.subr.mxu0 %v208
    %438 = vmatpush1.msra.mxu0 %v207
    %439 = vmatprep.subr.mxu0 %v210
    %440 = vmatpush1.msra.mxu0 %v209
    %441 = vmatprep.subr.mxu0 %v212
    %442 = vmatpush1.msra.mxu0 %v211
    %443 = vmatprep.subr.mxu0 %v214
    %444 = vmatpush1.msra.mxu0 %v213
    %445 = vmatprep.subr.mxu0 %v216
    %446 = vmatpush1.msra.mxu0 %v215
    %447 = vmatprep.subr.mxu0 %v218
    %448 = vmatpush1.msra.mxu0 %v217
    %449 = vmatprep.subr.mxu0 %v220
    %450 = vmatpush1.msra.mxu0 %v219
    %451 = vmatprep.subr.mxu0 %v222
    %452 = vmatpush1.msra.mxu0 %v221
    %453 = vmatprep.subr.mxu0 %v224
    %454 = vmatpush1.msra.mxu0 %v223
    %455 = vmatprep.mubr.f32.mxu0 %v26
    %456 = vmatmul.mubr.f32.gmra.mrb[0].mxu0 %v25
    %v457 = vpop.f32.mrb[0].mxu0
    %v458 = vadd.f32 %v381, %v457
    %v459 = vpop.f32.mrb[0].mxu0
    %v460 = vadd.f32 %v383, %v459
    %461 = vmatprep.mubr.f32.mxu0 %v32
    %462 = vmatmul.mubr.f32.gmra.mrb[0].mxu0 %v31
    %v463 = vpop.f32.mrb[0].mxu0
    %v464 = vadd.f32 %v387, %v463
    %v465 = vpop.f32.mrb[0].mxu0
    %v466 = vadd.f32 %v389, %v465
    %467 = vdwg.mxu0
    %v468 = vmax.f32 %v458, 0.0
    %v469 = vmax.f32 %v460, 0.0
    %v470 = vmax.f32 %v464, 0.0
    %v471 = vmax.f32 %v466, 0.0
    %v472 = vld [vmem:[%s3] sm:$0xff]
    %v473 = vld [vmem:[%s3 + $0x8] sm:$0xff]
    %v474 = vld [vmem:[%s3 + $0x10] sm:$0xff]
    %v475 = vld [vmem:[%s3 + $0x18] sm:$0xff]
    %v476 = vld [vmem:[%s3 + $0x20] sm:$0xff]
    %v477 = vld [vmem:[%s3 + $0x28] sm:$0xff]
    %v478 = vld [vmem:[%s3 + $0x30] sm:$0xff]
    %v479 = vld [vmem:[%s3 + $0x38] sm:$0xff]
    %v480 = vld [vmem:[%s3 + $0x40] sm:$0xff]
    %v481 = vld [vmem:[%s3 + $0x48] sm:$0xff]
    %v482 = vld [vmem:[%s3 + $0x50] sm:$0xff]
    %v483 = vld [vmem:[%s3 + $0x58] sm:$0xff]
    %v484 = vld [vmem:[%s3 + $0x60] sm:$0xff]
    %v485 = vld [vmem:[%s3 + $0x68] sm:$0xff]
    %v486 = vld [vmem:[%s3 + $0x70] sm:$0xff]
    %v487 = vld [vmem:[%s3 + $0x78] sm:$0xff]
    %v488 = vld [vmem:[%s3 + $0x80] sm:$0xff]
    %v489 = vld [vmem:[%s3 + $0x88] sm:$0xff]
    %v490 = vld [vmem:[%s3 + $0x90] sm:$0xff]
    %v491 = vld [vmem:[%s3 + $0x98] sm:$0xff]
    %v492 = vld [vmem:[%s3 + $0xa0] sm:$0xff]
    %v493 = vld [vmem:[%s3 + $0xa8] sm:$0xff]
    %v494 = vld [vmem:[%s3 + $0xb0] sm:$0xff]
    %v495 = vld [vmem:[%s3 + $0xb8] sm:$0xff]
    %v496 = vld [vmem:[%s3 + $0xc0] sm:$0xff]
    %v497 = vld [vmem:[%s3 + $0xc8] sm:$0xff]
    %v498 = vld [vmem:[%s3 + $0xd0] sm:$0xff]
    %v499 = vld [vmem:[%s3 + $0xd8] sm:$0xff]
    %v500 = vld [vmem:[%s3 + $0xe0] sm:$0xff]
    %v501 = vld [vmem:[%s3 + $0xe8] sm:$0xff]
    %v502 = vld [vmem:[%s3 + $0xf0] sm:$0xff]
    %v503 = vld [vmem:[%s3 + $0xf8] sm:$0xff]
    %v504 = vld [vmem:[%s3 + $0x100] sm:$0xff]
    %v505 = vld [vmem:[%s3 + $0x108] sm:$0xff]
    %v506 = vld [vmem:[%s3 + $0x110] sm:$0xff]
    %v507 = vld [vmem:[%s3 + $0x118] sm:$0xff]
    %v508 = vld [vmem:[%s3 + $0x120] sm:$0xff]
    %v509 = vld [vmem:[%s3 + $0x128] sm:$0xff]
    %v510 = vld [vmem:[%s3 + $0x130] sm:$0xff]
    %v511 = vld [vmem:[%s3 + $0x138] sm:$0xff]
    %v512 = vld [vmem:[%s3 + $0x140] sm:$0xff]
    %v513 = vld [vmem:[%s3 + $0x148] sm:$0xff]
    %v514 = vld [vmem:[%s3 + $0x150] sm:$0xff]
    %v515 = vld [vmem:[%s3 + $0x158] sm:$0xff]
    %v516 = vld [vmem:[%s3 + $0x160] sm:$0xff]
    %v517 = vld [vmem:[%s3 + $0x168] sm:$0xff]
    %v518 = vld [vmem:[%s3 + $0x170] sm:$0xff]
    %v519 = vld [vmem:[%s3 + $0x178] sm:$0xff]
    %v520 = vld [vmem:[%s3 + $0x180] sm:$0xff]
    %v521 = vld [vmem:[%s3 + $0x188] sm:$0xff]
    %v522 = vld [vmem:[%s3 + $0x190] sm:$0xff]
    %v523 = vld [vmem:[%s3 + $0x198] sm:$0xff]
    %v524 = vld [vmem:[%s3 + $0x1a0] sm:$0xff]
    %v525 = vld [vmem:[%s3 + $0x1a8] sm:$0xff]
    %v526 = vld [vmem:[%s3 + $0x1b0] sm:$0xff]
    %v527 = vld [vmem:[%s3 + $0x1b8] sm:$0xff]
    %v528 = vld [vmem:[%s3 + $0x1c0] sm:$0xff]
    %v529 = vld [vmem:[%s3 + $0x1c8] sm:$0xff]
    %v530 = vld [vmem:[%s3 + $0x1d0] sm:$0xff]
    %v531 = vld [vmem:[%s3 + $0x1d8] sm:$0xff]
    %v532 = vld [vmem:[%s3 + $0x1e0] sm:$0xff]
    %v533 = vld [vmem:[%s3 + $0x1e8] sm:$0xff]
    %v534 = vld [vmem:[%s3 + $0x1f0] sm:$0xff]
    %v535 = vld [vmem:[%s3 + $0x1f8] sm:$0xff]
    %v536 = vld [vmem:[%s3 + $0x200] sm:$0xff]
    %v537 = vld [vmem:[%s3 + $0x208] sm:$0xff]
    %v538 = vld [vmem:[%s3 + $0x210] sm:$0xff]
    %v539 = vld [vmem:[%s3 + $0x218] sm:$0xff]
    %v540 = vld [vmem:[%s3 + $0x220] sm:$0xff]
    %v541 = vld [vmem:[%s3 + $0x228] sm:$0xff]
    %v542 = vld [vmem:[%s3 + $0x230] sm:$0xff]
    %v543 = vld [vmem:[%s3 + $0x238] sm:$0xff]
    %v544 = vld [vmem:[%s3 + $0x240] sm:$0xff]
    %v545 = vld [vmem:[%s3 + $0x248] sm:$0xff]
    %v546 = vld [vmem:[%s3 + $0x250] sm:$0xff]
    %v547 = vld [vmem:[%s3 + $0x258] sm:$0xff]
    %v548 = vld [vmem:[%s3 + $0x260] sm:$0xff]
    %v549 = vld [vmem:[%s3 + $0x268] sm:$0xff]
    %v550 = vld [vmem:[%s3 + $0x270] sm:$0xff]
    %v551 = vld [vmem:[%s3 + $0x278] sm:$0xff]
    %v552 = vld [vmem:[%s3 + $0x280] sm:$0xff]
    %v553 = vld [vmem:[%s3 + $0x288] sm:$0xff]
    %v554 = vld [vmem:[%s3 + $0x290] sm:$0xff]
    %v555 = vld [vmem:[%s3 + $0x298] sm:$0xff]
    %v556 = vld [vmem:[%s3 + $0x2a0] sm:$0xff]
    %v557 = vld [vmem:[%s3 + $0x2a8] sm:$0xff]
    %v558 = vld [vmem:[%s3 + $0x2b0] sm:$0xff]
    %v559 = vld [vmem:[%s3 + $0x2b8] sm:$0xff]
    %v560 = vld [vmem:[%s3 + $0x2c0] sm:$0xff]
    %v561 = vld [vmem:[%s3 + $0x2c8] sm:$0xff]
    %v562 = vld [vmem:[%s3 + $0x2d0] sm:$0xff]
    %v563 = vld [vmem:[%s3 + $0x2d8] sm:$0xff]
    %v564 = vld [vmem:[%s3 + $0x2e0] sm:$0xff]
    %v565 = vld [vmem:[%s3 + $0x2e8] sm:$0xff]
    %v566 = vld [vmem:[%s3 + $0x2f0] sm:$0xff]
    %v567 = vld [vmem:[%s3 + $0x2f8] sm:$0xff]
    %v568 = vld [vmem:[%s3 + $0x300] sm:$0xff]
    %v569 = vld [vmem:[%s3 + $0x308] sm:$0xff]
    %v570 = vld [vmem:[%s3 + $0x310] sm:$0xff]
    %v571 = vld [vmem:[%s3 + $0x318] sm:$0xff]
    %v572 = vld [vmem:[%s3 + $0x320] sm:$0xff]
    %v573 = vld [vmem:[%s3 + $0x328] sm:$0xff]
    %v574 = vld [vmem:[%s3 + $0x330] sm:$0xff]
    %v575 = vld [vmem:[%s3 + $0x338] sm:$0xff]
    %v576 = vld [vmem:[%s3 + $0x340] sm:$0xff]
    %v577 = vld [vmem:[%s3 + $0x348] sm:$0xff]
    %v578 = vld [vmem:[%s3 + $0x350] sm:$0xff]
    %v579 = vld [vmem:[%s3 + $0x358] sm:$0xff]
    %v580 = vld [vmem:[%s3 + $0x360] sm:$0xff]
    %v581 = vld [vmem:[%s3 + $0x368] sm:$0xff]
    %v582 = vld [vmem:[%s3 + $0x370] sm:$0xff]
    %v583 = vld [vmem:[%s3 + $0x378] sm:$0xff]
    %v584 = vld [vmem:[%s3 + $0x380] sm:$0xff]
    %v585 = vld [vmem:[%s3 + $0x388] sm:$0xff]
    %v586 = vld [vmem:[%s3 + $0x390] sm:$0xff]
    %v587 = vld [vmem:[%s3 + $0x398] sm:$0xff]
    %v588 = vld [vmem:[%s3 + $0x3a0] sm:$0xff]
    %v589 = vld [vmem:[%s3 + $0x3a8] sm:$0xff]
    %v590 = vld [vmem:[%s3 + $0x3b0] sm:$0xff]
    %v591 = vld [vmem:[%s3 + $0x3b8] sm:$0xff]
    %v592 = vld [vmem:[%s3 + $0x3c0] sm:$0xff]
    %v593 = vld [vmem:[%s3 + $0x3c8] sm:$0xff]
    %v594 = vld [vmem:[%s3 + $0x3d0] sm:$0xff]
    %v595 = vld [vmem:[%s3 + $0x3d8] sm:$0xff]
    %v596 = vld [vmem:[%s3 + $0x3e0] sm:$0xff]
    %v597 = vld [vmem:[%s3 + $0x3e8] sm:$0xff]
    %v598 = vld [vmem:[%s3 + $0x3f0] sm:$0xff]
    %v599 = vld [vmem:[%s3 + $0x3f8] sm:$0xff]
    %v600 = vld [vmem:[%s3 + $0x400] sm:$0xff]
    %v601 = vld [vmem:[%s3 + $0x408] sm:$0xff]
    %v602 = vld [vmem:[%s3 + $0x410] sm:$0xff]
    %v603 = vld [vmem:[%s3 + $0x418] sm:$0xff]
    %v604 = vld [vmem:[%s3 + $0x420] sm:$0xff]
    %v605 = vld [vmem:[%s3 + $0x428] sm:$0xff]
    %v606 = vld [vmem:[%s3 + $0x430] sm:$0xff]
    %v607 = vld [vmem:[%s3 + $0x438] sm:$0xff]
    %v608 = vld [vmem:[%s3 + $0x440] sm:$0xff]
    %v609 = vld [vmem:[%s3 + $0x448] sm:$0xff]
    %v610 = vld [vmem:[%s3 + $0x450] sm:$0xff]
    %v611 = vld [vmem:[%s3 + $0x458] sm:$0xff]
    %v612 = vld [vmem:[%s3 + $0x460] sm:$0xff]
    %v613 = vld [vmem:[%s3 + $0x468] sm:$0xff]
    %v614 = vld [vmem:[%s3 + $0x470] sm:$0xff]
    %v615 = vld [vmem:[%s3 + $0x478] sm:$0xff]
    %v616 = vld [vmem:[%s4] sm:$0x3f]
    %v618 = vlaneseq
    %v619 = vshrl.u32 %v618, 7
    %v620 = vsub.s32 0, %v619
    %v621 = vrot.slane %v616, %v620
    %v622 = vlaneseq
    %v623 = vshrl.u32 %v622, 7
    %v624 = vsub.s32 1, %v623
    %v625 = vrot.slane %v616, %v624
    %v626 = vlaneseq
    %v627 = vshrl.u32 %v626, 7
    %v628 = vsub.s32 2, %v627
    %v629 = vrot.slane %v616, %v628
    %v630 = vlaneseq
    %v631 = vshrl.u32 %v630, 7
    %v632 = vsub.s32 3, %v631
    %v633 = vrot.slane %v616, %v632
    %v634 = vlaneseq
    %v635 = vshrl.u32 %v634, 7
    %v636 = vsub.s32 4, %v635
    %v637 = vrot.slane %v616, %v636
    %v638 = vlaneseq
    %v639 = vshrl.u32 %v638, 7
    %v640 = vsub.s32 5, %v639
    %v641 = vrot.slane %v616, %v640
    %vm648 = vcmask 523264
    %v650 = vsel %vm648, %v469, 0
    %v653 = vsel %vm648, %v471, 0
    %655 = vmatprep.subr.mxu0 %v473
    %656 = vmatpush1.msra.mxu0 %v472
    %657 = vmatprep.subr.mxu0 %v479
    %658 = vmatpush1.msra.mxu0 %v478
    %659 = vmatprep.subr.mxu0 %v485
    %660 = vmatpush1.msra.mxu0 %v484
    %661 = vmatprep.subr.mxu0 %v491
    %662 = vmatpush1.msra.mxu0 %v490
    %663 = vmatprep.subr.mxu0 %v497
    %664 = vmatpush1.msra.mxu0 %v496
    %665 = vmatprep.subr.mxu0 %v503
    %666 = vmatpush1.msra.mxu0 %v502
    %667 = vmatprep.subr.mxu0 %v509
    %668 = vmatpush1.msra.mxu0 %v508
    %669 = vmatprep.subr.mxu0 %v515
    %670 = vmatpush1.msra.mxu0 %v514
    %671 = vmatprep.subr.mxu0 %v521
    %672 = vmatpush1.msra.mxu0 %v520
    %673 = vmatprep.subr.mxu0 %v527
    %674 = vmatpush1.msra.mxu0 %v526
    %675 = vmatprep.subr.mxu0 %v533
    %676 = vmatpush1.msra.mxu0 %v532
    %677 = vmatprep.subr.mxu0 %v539
    %678 = vmatpush1.msra.mxu0 %v538
    %679 = vmatprep.subr.mxu0 %v545
    %680 = vmatpush1.msra.mxu0 %v544
    %681 = vmatprep.subr.mxu0 %v551
    %682 = vmatpush1.msra.mxu0 %v550
    %683 = vmatprep.subr.mxu0 %v557
    %684 = vmatpush1.msra.mxu0 %v556
    %685 = vmatprep.subr.mxu0 %v563
    %686 = vmatpush1.msra.mxu0 %v562
    %687 = vmatprep.subr.mxu0 %v569
    %688 = vmatpush1.msra.mxu0 %v568
    %689 = vmatprep.subr.mxu0 %v575
    %690 = vmatpush1.msra.mxu0 %v574
    %691 = vmatprep.subr.mxu0 %v581
    %692 = vmatpush1.msra.mxu0 %v580
    %693 = vmatprep.subr.mxu0 %v587
    %694 = vmatpush1.msra.mxu0 %v586
    %695 = vmatprep.subr.mxu0 %v593
    %696 = vmatpush1.msra.mxu0 %v592
    %697 = vmatprep.subr.mxu0 %v599
    %698 = vmatpush1.msra.mxu0 %v598
    %699 = vmatprep.subr.mxu0 %v605
    %700 = vmatpush1.msra.mxu0 %v604
    %701 = vmatprep.subr.mxu0 %v611
    %702 = vmatpush1.msra.mxu0 %v610
    %703 = vmatprep.subr.mxu0 0.0
    %704 = vmatpush1.msra.mxu0 0.0
    %705 = vmatprep.subr.mxu0 0.0
    %706 = vmatpush1.msra.mxu0 0.0
    %707 = vmatprep.subr.mxu0 0.0
    %708 = vmatpush1.msra.mxu0 0.0
    %709 = vmatprep.subr.mxu0 0.0
    %710 = vmatpush1.msra.mxu0 0.0
    %711 = vmatprep.subr.mxu0 0.0
    %712 = vmatpush1.msra.mxu0 0.0
    %713 = vmatprep.subr.mxu0 0.0
    %714 = vmatpush1.msra.mxu0 0.0
    %715 = vmatprep.subr.mxu0 0.0
    %716 = vmatpush1.msra.mxu0 0.0
    %717 = vmatprep.subr.mxu0 0.0
    %718 = vmatpush1.msra.mxu0 0.0
    %719 = vmatprep.mubr.f32.mxu0 %v650
    %720 = vmatmul.mubr.f32.gmra.mrb[0].mxu0 %v468
    %v721 = vpop.f32.mrb[0].mxu0
    %v722 = vadd.f32 %v621, %v721
    %v723 = vpop.f32.mrb[0].mxu0
    %v724 = vadd.f32 %v625, %v723
    %725 = vmatprep.mubr.f32.mxu0 %v653
    %726 = vmatmul.mubr.f32.gmra.mrb[0].mxu0 %v470
    %v727 = vpop.f32.mrb[0].mxu0
    %v728 = vadd.f32 %v621, %v727
    %v729 = vpop.f32.mrb[0].mxu0
    %v730 = vadd.f32 %v625, %v729
    %731 = vdwg.mxu0
    %732 = vmatprep.subr.mxu0 %v475
    %733 = vmatpush1.msra.mxu0 %v474
    %734 = vmatprep.subr.mxu0 %v481
    %735 = vmatpush1.msra.mxu0 %v480
    %736 = vmatprep.subr.mxu0 %v487
    %737 = vmatpush1.msra.mxu0 %v486
    %738 = vmatprep.subr.mxu0 %v493
    %739 = vmatpush1.msra.mxu0 %v492
    %740 = vmatprep.subr.mxu0 %v499
    %741 = vmatpush1.msra.mxu0 %v498
    %742 = vmatprep.subr.mxu0 %v505
    %743 = vmatpush1.msra.mxu0 %v504
    %744 = vmatprep.subr.mxu0 %v511
    %745 = vmatpush1.msra.mxu0 %v510
    %746 = vmatprep.subr.mxu0 %v517
    %747 = vmatpush1.msra.mxu0 %v516
    %748 = vmatprep.subr.mxu0 %v523
    %749 = vmatpush1.msra.mxu0 %v522
    %750 = vmatprep.subr.mxu0 %v529
    %751 = vmatpush1.msra.mxu0 %v528
    %752 = vmatprep.subr.mxu0 %v535
    %753 = vmatpush1.msra.mxu0 %v534
    %754 = vmatprep.subr.mxu0 %v541
    %755 = vmatpush1.msra.mxu0 %v540
    %756 = vmatprep.subr.mxu0 %v547
    %757 = vmatpush1.msra.mxu0 %v546
    %758 = vmatprep.subr.mxu0 %v553
    %759 = vmatpush1.msra.mxu0 %v552
    %760 = vmatprep.subr.mxu0 %v559
    %761 = vmatpush1.msra.mxu0 %v558
    %762 = vmatprep.subr.mxu0 %v565
    %763 = vmatpush1.msra.mxu0 %v564
    %764 = vmatprep.subr.mxu0 %v571
    %765 = vmatpush1.msra.mxu0 %v570
    %766 = vmatprep.subr.mxu0 %v577
    %767 = vmatpush1.msra.mxu0 %v576
    %768 = vmatprep.subr.mxu0 %v583
    %769 = vmatpush1.msra.mxu0 %v582
    %770 = vmatprep.subr.mxu0 %v589
    %771 = vmatpush1.msra.mxu0 %v588
    %772 = vmatprep.subr.mxu0 %v595
    %773 = vmatpush1.msra.mxu0 %v594
    %774 = vmatprep.subr.mxu0 %v601
    %775 = vmatpush1.msra.mxu0 %v600
    %776 = vmatprep.subr.mxu0 %v607
    %777 = vmatpush1.msra.mxu0 %v606
    %778 = vmatprep.subr.mxu0 %v613
    %779 = vmatpush1.msra.mxu0 %v612
    %780 = vmatprep.subr.mxu0 0.0
    %781 = vmatpush1.msra.mxu0 0.0
    %782 = vmatprep.subr.mxu0 0.0
    %783 = vmatpush1.msra.mxu0 0.0
    %784 = vmatprep.subr.mxu0 0.0
    %785 = vmatpush1.msra.mxu0 0.0
    %786 = vmatprep.subr.mxu0 0.0
    %787 = vmatpush1.msra.mxu0 0.0
    %788 = vmatprep.subr.mxu0 0.0
    %789 = vmatpush1.msra.mxu0 0.0
    %790 = vmatprep.subr.mxu0 0.0
    %791 = vmatpush1.msra.mxu0 0.0
    %792 = vmatprep.subr.mxu0 0.0
    %793 = vmatpush1.msra.mxu0 0.0
    %794 = vmatprep.subr.mxu0 0.0
    %795 = vmatpush1.msra.mxu0 0.0
    %796 = vmatprep.mubr.f32.mxu0 %v650
    %797 = vmatmul.mubr.f32.gmra.mrb[0].mxu0 %v468
    %v798 = vpop.f32.mrb[0].mxu0
    %v799 = vadd.f32 %v629, %v798
    %v800 = vpop.f32.mrb[0].mxu0
    %v801 = vadd.f32 %v633, %v800
    %802 = vmatprep.mubr.f32.mxu0 %v653
    %803 = vmatmul.mubr.f32.gmra.mrb[0].mxu0 %v470
    %v804 = vpop.f32.mrb[0].mxu0
    %v805 = vadd.f32 %v629, %v804
    %v806 = vpop.f32.mrb[0].mxu0
    %v807 = vadd.f32 %v633, %v806
    %808 = vdwg.mxu0
    %809 = vmatprep.subr.mxu0 %v477
    %810 = vmatpush1.msra.mxu0 %v476
    %811 = vmatprep.subr.mxu0 %v483
    %812 = vmatpush1.msra.mxu0 %v482
    %813 = vmatprep.subr.mxu0 %v489
    %814 = vmatpush1.msra.mxu0 %v488
    %815 = vmatprep.subr.mxu0 %v495
    %816 = vmatpush1.msra.mxu0 %v494
    %817 = vmatprep.subr.mxu0 %v501
    %818 = vmatpush1.msra.mxu0 %v500
    %819 = vmatprep.subr.mxu0 %v507
    %820 = vmatpush1.msra.mxu0 %v506
    %821 = vmatprep.subr.mxu0 %v513
    %822 = vmatpush1.msra.mxu0 %v512
    %823 = vmatprep.subr.mxu0 %v519
    %824 = vmatpush1.msra.mxu0 %v518
    %825 = vmatprep.subr.mxu0 %v525
    %826 = vmatpush1.msra.mxu0 %v524
    %827 = vmatprep.subr.mxu0 %v531
    %828 = vmatpush1.msra.mxu0 %v530
    %829 = vmatprep.subr.mxu0 %v537
    %830 = vmatpush1.msra.mxu0 %v536
    %831 = vmatprep.subr.mxu0 %v543
    %832 = vmatpush1.msra.mxu0 %v542
    %833 = vmatprep.subr.mxu0 %v549
    %834 = vmatpush1.msra.mxu0 %v548
    %835 = vmatprep.subr.mxu0 %v555
    %836 = vmatpush1.msra.mxu0 %v554
    %837 = vmatprep.subr.mxu0 %v561
    %838 = vmatpush1.msra.mxu0 %v560
    %839 = vmatprep.subr.mxu0 %v567
    %840 = vmatpush1.msra.mxu0 %v566
    %841 = vmatprep.subr.mxu0 %v573
    %842 = vmatpush1.msra.mxu0 %v572
    %843 = vmatprep.subr.mxu0 %v579
    %844 = vmatpush1.msra.mxu0 %v578
    %845 = vmatprep.subr.mxu0 %v585
    %846 = vmatpush1.msra.mxu0 %v584
    %847 = vmatprep.subr.mxu0 %v591
    %848 = vmatpush1.msra.mxu0 %v590
    %849 = vmatprep.subr.mxu0 %v597
    %850 = vmatpush1.msra.mxu0 %v596
    %851 = vmatprep.subr.mxu0 %v603
    %852 = vmatpush1.msra.mxu0 %v602
    %853 = vmatprep.subr.mxu0 %v609
    %854 = vmatpush1.msra.mxu0 %v608
    %855 = vmatprep.subr.mxu0 %v615
    %856 = vmatpush1.msra.mxu0 %v614
    %857 = vmatprep.subr.mxu0 0.0
    %858 = vmatpush1.msra.mxu0 0.0
    %859 = vmatprep.subr.mxu0 0.0
    %860 = vmatpush1.msra.mxu0 0.0
    %861 = vmatprep.subr.mxu0 0.0
    %862 = vmatpush1.msra.mxu0 0.0
    %863 = vmatprep.subr.mxu0 0.0
    %864 = vmatpush1.msra.mxu0 0.0
    %865 = vmatprep.subr.mxu0 0.0
    %866 = vmatpush1.msra.mxu0 0.0
    %867 = vmatprep.subr.mxu0 0.0
    %868 = vmatpush1.msra.mxu0 0.0
    %869 = vmatprep.subr.mxu0 0.0
    %870 = vmatpush1.msra.mxu0 0.0
    %871 = vmatprep.subr.mxu0 0.0
    %872 = vmatpush1.msra.mxu0 0.0
    %873 = vmatprep.mubr.f32.mxu0 %v650
    %874 = vmatmul.mubr.f32.gmra.mrb[0].mxu0 %v468
    %v875 = vpop.f32.mrb[0].mxu0
    %v876 = vadd.f32 %v637, %v875
    %v877 = vpop.f32.mrb[0].mxu0
    %v878 = vadd.f32 %v641, %v877
    %879 = vmatprep.mubr.f32.mxu0 %v653
    %880 = vmatmul.mubr.f32.gmra.mrb[0].mxu0 %v470
    %v881 = vpop.f32.mrb[0].mxu0
    %v882 = vadd.f32 %v637, %v881
    %v883 = vpop.f32.mrb[0].mxu0
    %v884 = vadd.f32 %v641, %v883
    %885 = vdwg.mxu0
    %v886 = vmax.f32 %v722, 0.0
    %v887 = vmax.f32 %v724, 0.0
    %v888 = vmax.f32 %v799, 0.0
    %v889 = vmax.f32 %v801, 0.0
    %v890 = vmax.f32 %v876, 0.0
    %v891 = vmax.f32 %v878, 0.0
    %v892 = vmax.f32 %v728, 0.0
    %v893 = vmax.f32 %v730, 0.0
    %v894 = vmax.f32 %v805, 0.0
    %v895 = vmax.f32 %v807, 0.0
    %v896 = vmax.f32 %v882, 0.0
    %v897 = vmax.f32 %v884, 0.0
    %v898 = vmul.f32 %v21, %v886
    %v899 = vmul.f32 %v22, %v887
    %v900 = vmul.f32 %v23, %v888
    %v901 = vmul.f32 %v24, %v889
    %v902 = vmul.f32 %v25, %v890
    %v903 = vmul.f32 %v26, %v891
    %v904 = vmul.f32 %v27, %v892
    %v905 = vmul.f32 %v28, %v893
    %v906 = vmul.f32 %v29, %v894
    %v907 = vmul.f32 %v30, %v895
    %v908 = vmul.f32 %v31, %v896
    %v909 = vmul.f32 %v32, %v897
    %910 = vst [vmem:[#allocation2] sm:$0xff] %v898
    %911 = vst [vmem:[#allocation2 + $0x8] sm:$0xff] %v899
    %912 = vst [vmem:[#allocation2 + $0x10] sm:$0xff] %v900
    %913 = vst [vmem:[#allocation2 + $0x18] sm:$0xff] %v901
    %914 = vst [vmem:[#allocation2 + $0x20] sm:$0xff] %v902
    %915 = vst [vmem:[#allocation2 + $0x28] sm:$0xff] %v903
    %916 = vst [vmem:[#allocation2 + $0x30] sm:$0xff] %v904
    %917 = vst [vmem:[#allocation2 + $0x38] sm:$0xff] %v905
    %918 = vst [vmem:[#allocation2 + $0x40] sm:$0xff] %v906
    %919 = vst [vmem:[#allocation2 + $0x48] sm:$0xff] %v907
    %920 = vst [vmem:[#allocation2 + $0x50] sm:$0xff] %v908
    %921 = vst [vmem:[#allocation2 + $0x58] sm:$0xff] %v909
    // Predicated region
    $region22: #{tpu_custom_call.1} parent=1 // pred_check
      _
    $region23: #{tpu_custom_call.1} parent=1 // pred_check_branch
      %923 = sbr.rel (0) target = $region25
    $region24: #{tpu_custom_call.1} parent=1 // pred_region
      %s925 = ssub.s32 1536, 1536
      %926 = vsyncadd [#allocation3], %s925
      %s927 = sshll.u32 [#allocation2], 4
      %s928 = int_to_ptr.vmem [resolvable:$true] %s927
      %933 = dma.vmem_to_hbm [thread:$0]  %s928, 1536, %s5, [#allocation3], 768, 768, 48
    $region25: #{tpu_custom_call.1} parent=1 // pred_fallthru
      _
    // Predicated region
    $region26: #{tpu_custom_call.1} parent=1 // pred_check
      _
    $region27: #{tpu_custom_call.1} parent=1 // pred_check_branch
      %935 = sbr.rel (0) target = $region29
    $region28: #{tpu_custom_call.1} parent=1 // pred_region
      %936 = dma.done [#allocation3], 1536
    $region29: #{tpu_custom_call.1} parent=1 // pred_fallthru
      _
    %937 = vsyncpa [#allocation3], 1

// kernel: tpu_custom_call.1
$region0: #{tpu_custom_call.1}
  #allocation0 [shape = 'u32[]', space=smem, size = 0x4, offset = 0x4, fixed_abs, tag = 'smem constant byte address 0x4 - core index']
  #allocation1 [shape = 'u32[144,128]{1,0:T(1,128)}', space=vmem, size = 0x12000, scoped, tag = 'internal scratch']
  %s0 = inlined_call_operand.vmem [shape: f32[16,768], index: 0, kind: input, shape index: {}]
  %s1 = inlined_call_operand.vmem [shape: f32[768,192], index: 1, kind: input, shape index: {}]
  %s2 = inlined_call_operand.vmem [shape: f32[1,192], index: 2, kind: input, shape index: {}]
  %s3 = inlined_call_operand.vmem [shape: f32[192,768], index: 3, kind: input, shape index: {}]
  %s4 = inlined_call_operand.vmem [shape: f32[1,768], index: 4, kind: input, shape index: {}]
  %s5 = inlined_call_operand.hbm [shape: f32[16,768], index: 5, kind: output, shape index: {}]
  %s6 = sld [smem:[#allocation0]]
  $region30: #{tpu_custom_call.1} parent=0
    _
  %s8 = ssub.s32 1, %s6
  %s9 = scalar_select 0, %s8, %s6
  $region1: #{tpu_custom_call.1} parent=0
    #allocation2 [shape = 'u8[49152]{0}', space=vmem, size = 0xc000, scoped, tag = 'output window, operand 0, single buffered']
    #allocation3 [shape = 's32[1]{0}', space=sflag, size = 0x4, scoped, tag = 'scoped memory for tpu_custom_call.1']
    %10 = vsyncpa [#allocation3], 0
    // Predicated region
    $region2: #{tpu_custom_call.1} parent=1 // pred_check
      _
    $region3: #{tpu_custom_call.1} parent=1 // pred_check_branch
      %12 = sbr.rel (0) target = $region5
    $region4: #{tpu_custom_call.1} parent=1 // pred_region
      _
    $region5: #{tpu_custom_call.1} parent=1 // pred_fallthru
      _
    // Predicated region
    $region6: #{tpu_custom_call.1} parent=1 // pred_check
      _
    $region7: #{tpu_custom_call.1} parent=1 // pred_check_branch
      %14 = sbr.rel (0) target = $region9
    $region8: #{tpu_custom_call.1} parent=1 // pred_region
      _
    $region9: #{tpu_custom_call.1} parent=1 // pred_fallthru
      _
    // Predicated region
    $region10: #{tpu_custom_call.1} parent=1 // pred_check
      _
    $region11: #{tpu_custom_call.1} parent=1 // pred_check_branch
      %16 = sbr.rel (0) target = $region13
    $region12: #{tpu_custom_call.1} parent=1 // pred_region
      _
    $region13: #{tpu_custom_call.1} parent=1 // pred_fallthru
      _
    // Predicated region
    $region14: #{tpu_custom_call.1} parent=1 // pred_check
      _
    $region15: #{tpu_custom_call.1} parent=1 // pred_check_branch
      %18 = sbr.rel (0) target = $region17
    $region16: #{tpu_custom_call.1} parent=1 // pred_region
      _
    $region17: #{tpu_custom_call.1} parent=1 // pred_fallthru
      _
    // Predicated region
    $region18: #{tpu_custom_call.1} parent=1 // pred_check
      _
    $region19: #{tpu_custom_call.1} parent=1 // pred_check_branch
      %20 = sbr.rel (0) target = $region21
    $region20: #{tpu_custom_call.1} parent=1 // pred_region
      _
    $region21: #{tpu_custom_call.1} parent=1 // pred_fallthru
      _
    %v21 = vld [vmem:[%s0] sm:$0xff]
    %v22 = vld [vmem:[%s0 + $0x8] sm:$0xff]
    %v23 = vld [vmem:[%s0 + $0x10] sm:$0xff]
    %v24 = vld [vmem:[%s0 + $0x18] sm:$0xff]
    %v25 = vld [vmem:[%s0 + $0x20] sm:$0xff]
    %v26 = vld [vmem:[%s0 + $0x28] sm:$0xff]
    %v27 = vld [vmem:[%s0 + $0x30] sm:$0xff]
    %v28 = vld [vmem:[%s0 + $0x38] sm:$0xff]
    %v29 = vld [vmem:[%s0 + $0x40] sm:$0xff]
    %v30 = vld [vmem:[%s0 + $0x48] sm:$0xff]
    %v31 = vld [vmem:[%s0 + $0x50] sm:$0xff]
    %v32 = vld [vmem:[%s0 + $0x58] sm:$0xff]
    %v33 = vld [vmem:[%s1] sm:$0xff]
    %v34 = vld [vmem:[%s1 + $0x8] sm:$0xff]
    %v35 = vld [vmem:[%s1 + $0x10] sm:$0xff]
    %v36 = vld [vmem:[%s1 + $0x18] sm:$0xff]
    %v37 = vld [vmem:[%s1 + $0x20] sm:$0xff]
    %v38 = vld [vmem:[%s1 + $0x28] sm:$0xff]
    %v39 = vld [vmem:[%s1 + $0x30] sm:$0xff]
    %v40 = vld [vmem:[%s1 + $0x38] sm:$0xff]
    %v41 = vld [vmem:[%s1 + $0x40] sm:$0xff]
    %v42 = vld [vmem:[%s1 + $0x48] sm:$0xff]
    %v43 = vld [vmem:[%s1 + $0x50] sm:$0xff]
    %v44 = vld [vmem:[%s1 + $0x58] sm:$0xff]
    %v45 = vld [vmem:[%s1 + $0x60] sm:$0xff]
    %v46 = vld [vmem:[%s1 + $0x68] sm:$0xff]
    %v47 = vld [vmem:[%s1 + $0x70] sm:$0xff]
    %v48 = vld [vmem:[%s1 + $0x78] sm:$0xff]
    %v49 = vld [vmem:[%s1 + $0x80] sm:$0xff]
    %v50 = vld [vmem:[%s1 + $0x88] sm:$0xff]
    %v51 = vld [vmem:[%s1 + $0x90] sm:$0xff]
    %v52 = vld [vmem:[%s1 + $0x98] sm:$0xff]
    %v53 = vld [vmem:[%s1 + $0xa0] sm:$0xff]
    %v54 = vld [vmem:[%s1 + $0xa8] sm:$0xff]
    %v55 = vld [vmem:[%s1 + $0xb0] sm:$0xff]
    %v56 = vld [vmem:[%s1 + $0xb8] sm:$0xff]
    %v57 = vld [vmem:[%s1 + $0xc0] sm:$0xff]
    %v58 = vld [vmem:[%s1 + $0xc8] sm:$0xff]
    %v59 = vld [vmem:[%s1 + $0xd0] sm:$0xff]
    %v60 = vld [vmem:[%s1 + $0xd8] sm:$0xff]
    %v61 = vld [vmem:[%s1 + $0xe0] sm:$0xff]
    %v62 = vld [vmem:[%s1 + $0xe8] sm:$0xff]
    %v63 = vld [vmem:[%s1 + $0xf0] sm:$0xff]
    %v64 = vld [vmem:[%s1 + $0xf8] sm:$0xff]
    %v65 = vld [vmem:[%s1 + $0x100] sm:$0xff]
    %v66 = vld [vmem:[%s1 + $0x108] sm:$0xff]
    %v67 = vld [vmem:[%s1 + $0x110] sm:$0xff]
    %v68 = vld [vmem:[%s1 + $0x118] sm:$0xff]
    %v69 = vld [vmem:[%s1 + $0x120] sm:$0xff]
    %v70 = vld [vmem:[%s1 + $0x128] sm:$0xff]
    %v71 = vld [vmem:[%s1 + $0x130] sm:$0xff]
    %v72 = vld [vmem:[%s1 + $0x138] sm:$0xff]
    %v73 = vld [vmem:[%s1 + $0x140] sm:$0xff]
    %v74 = vld [vmem:[%s1 + $0x148] sm:$0xff]
    %v75 = vld [vmem:[%s1 + $0x150] sm:$0xff]
    %v76 = vld [vmem:[%s1 + $0x158] sm:$0xff]
    %v77 = vld [vmem:[%s1 + $0x160] sm:$0xff]
    %v78 = vld [vmem:[%s1 + $0x168] sm:$0xff]
    %v79 = vld [vmem:[%s1 + $0x170] sm:$0xff]
    %v80 = vld [vmem:[%s1 + $0x178] sm:$0xff]
    %v81 = vld [vmem:[%s1 + $0x180] sm:$0xff]
    %v82 = vld [vmem:[%s1 + $0x188] sm:$0xff]
    %v83 = vld [vmem:[%s1 + $0x190] sm:$0xff]
    %v84 = vld [vmem:[%s1 + $0x198] sm:$0xff]
    %v85 = vld [vmem:[%s1 + $0x1a0] sm:$0xff]
    %v86 = vld [vmem:[%s1 + $0x1a8] sm:$0xff]
    %v87 = vld [vmem:[%s1 + $0x1b0] sm:$0xff]
    %v88 = vld [vmem:[%s1 + $0x1b8] sm:$0xff]
    %v89 = vld [vmem:[%s1 + $0x1c0] sm:$0xff]
    %v90 = vld [vmem:[%s1 + $0x1c8] sm:$0xff]
    %v91 = vld [vmem:[%s1 + $0x1d0] sm:$0xff]
    %v92 = vld [vmem:[%s1 + $0x1d8] sm:$0xff]
    %v93 = vld [vmem:[%s1 + $0x1e0] sm:$0xff]
    %v94 = vld [vmem:[%s1 + $0x1e8] sm:$0xff]
    %v95 = vld [vmem:[%s1 + $0x1f0] sm:$0xff]
    %v96 = vld [vmem:[%s1 + $0x1f8] sm:$0xff]
    %v97 = vld [vmem:[%s1 + $0x200] sm:$0xff]
    %v98 = vld [vmem:[%s1 + $0x208] sm:$0xff]
    %v99 = vld [vmem:[%s1 + $0x210] sm:$0xff]
    %v100 = vld [vmem:[%s1 + $0x218] sm:$0xff]
    %v101 = vld [vmem:[%s1 + $0x220] sm:$0xff]
    %v102 = vld [vmem:[%s1 + $0x228] sm:$0xff]
    %v103 = vld [vmem:[%s1 + $0x230] sm:$0xff]
    %v104 = vld [vmem:[%s1 + $0x238] sm:$0xff]
    %v105 = vld [vmem:[%s1 + $0x240] sm:$0xff]
    %v106 = vld [vmem:[%s1 + $0x248] sm:$0xff]
    %v107 = vld [vmem:[%s1 + $0x250] sm:$0xff]
    %v108 = vld [vmem:[%s1 + $0x258] sm:$0xff]
    %v109 = vld [vmem:[%s1 + $0x260] sm:$0xff]
    %v110 = vld [vmem:[%s1 + $0x268] sm:$0xff]
    %v111 = vld [vmem:[%s1 + $0x270] sm:$0xff]
    %v112 = vld [vmem:[%s1 + $0x278] sm:$0xff]
    %v113 = vld [vmem:[%s1 + $0x280] sm:$0xff]
    %v114 = vld [vmem:[%s1 + $0x288] sm:$0xff]
    %v115 = vld [vmem:[%s1 + $0x290] sm:$0xff]
    %v116 = vld [vmem:[%s1 + $0x298] sm:$0xff]
    %v117 = vld [vmem:[%s1 + $0x2a0] sm:$0xff]
    %v118 = vld [vmem:[%s1 + $0x2a8] sm:$0xff]
    %v119 = vld [vmem:[%s1 + $0x2b0] sm:$0xff]
    %v120 = vld [vmem:[%s1 + $0x2b8] sm:$0xff]
    %v121 = vld [vmem:[%s1 + $0x2c0] sm:$0xff]
    %v122 = vld [vmem:[%s1 + $0x2c8] sm:$0xff]
    %v123 = vld [vmem:[%s1 + $0x2d0] sm:$0xff]
    %v124 = vld [vmem:[%s1 + $0x2d8] sm:$0xff]
    %v125 = vld [vmem:[%s1 + $0x2e0] sm:$0xff]
    %v126 = vld [vmem:[%s1 + $0x2e8] sm:$0xff]
    %v127 = vld [vmem:[%s1 + $0x2f0] sm:$0xff]
    %v128 = vld [vmem:[%s1 + $0x2f8] sm:$0xff]
    %v129 = vld [vmem:[%s1 + $0x300] sm:$0xff]
    %v130 = vld [vmem:[%s1 + $0x308] sm:$0xff]
    %v131 = vld [vmem:[%s1 + $0x310] sm:$0xff]
    %v132 = vld [vmem:[%s1 + $0x318] sm:$0xff]
    %v133 = vld [vmem:[%s1 + $0x320] sm:$0xff]
    %v134 = vld [vmem:[%s1 + $0x328] sm:$0xff]
    %v135 = vld [vmem:[%s1 + $0x330] sm:$0xff]
    %v136 = vld [vmem:[%s1 + $0x338] sm:$0xff]
    %v137 = vld [vmem:[%s1 + $0x340] sm:$0xff]
    %v138 = vld [vmem:[%s1 + $0x348] sm:$0xff]
    %v139 = vld [vmem:[%s1 + $0x350] sm:$0xff]
    %v140 = vld [vmem:[%s1 + $0x358] sm:$0xff]
    %v141 = vld [vmem:[%s1 + $0x360] sm:$0xff]
    %v142 = vld [vmem:[%s1 + $0x368] sm:$0xff]
    %v143 = vld [vmem:[%s1 + $0x370] sm:$0xff]
    %v144 = vld [vmem:[%s1 + $0x378] sm:$0xff]
    %v145 = vld [vmem:[%s1 + $0x380] sm:$0xff]
    %v146 = vld [vmem:[%s1 + $0x388] sm:$0xff]
    %v147 = vld [vmem:[%s1 + $0x390] sm:$0xff]
    %v148 = vld [vmem:[%s1 + $0x398] sm:$0xff]
    %v149 = vld [vmem:[%s1 + $0x3a0] sm:$0xff]
    %v150 = vld [vmem:[%s1 + $0x3a8] sm:$0xff]
    %v151 = vld [vmem:[%s1 + $0x3b0] sm:$0xff]
    %v152 = vld [vmem:[%s1 + $0x3b8] sm:$0xff]
    %v153 = vld [vmem:[%s1 + $0x3c0] sm:$0xff]
    %v154 = vld [vmem:[%s1 + $0x3c8] sm:$0xff]
    %v155 = vld [vmem:[%s1 + $0x3d0] sm:$0xff]
    %v156 = vld [vmem:[%s1 + $0x3d8] sm:$0xff]
    %v157 = vld [vmem:[%s1 + $0x3e0] sm:$0xff]
    %v158 = vld [vmem:[%s1 + $0x3e8] sm:$0xff]
    %v159 = vld [vmem:[%s1 + $0x3f0] sm:$0xff]
    %v160 = vld [vmem:[%s1 + $0x3f8] sm:$0xff]
    %v161 = vld [vmem:[%s1 + $0x400] sm:$0xff]
    %v162 = vld [vmem:[%s1 + $0x408] sm:$0xff]
    %v163 = vld [vmem:[%s1 + $0x410] sm:$0xff]
    %v164 = vld [vmem:[%s1 + $0x418] sm:$0xff]
    %v165 = vld [vmem:[%s1 + $0x420] sm:$0xff]
    %v166 = vld [vmem:[%s1 + $0x428] sm:$0xff]
    %v167 = vld [vmem:[%s1 + $0x430] sm:$0xff]
    %v168 = vld [vmem:[%s1 + $0x438] sm:$0xff]
    %v169 = vld [vmem:[%s1 + $0x440] sm:$0xff]
    %v170 = vld [vmem:[%s1 + $0x448] sm:$0xff]
    %v171 = vld [vmem:[%s1 + $0x450] sm:$0xff]
    %v172 = vld [vmem:[%s1 + $0x458] sm:$0xff]
    %v173 = vld [vmem:[%s1 + $0x460] sm:$0xff]
    %v174 = vld [vmem:[%s1 + $0x468] sm:$0xff]
    %v175 = vld [vmem:[%s1 + $0x470] sm:$0xff]
    %v176 = vld [vmem:[%s1 + $0x478] sm:$0xff]
    %v177 = vld [vmem:[%s1 + $0x480] sm:$0xff]
    %v178 = vld [vmem:[%s1 + $0x488] sm:$0xff]
    %v179 = vld [vmem:[%s1 + $0x490] sm:$0xff]
    %v180 = vld [vmem:[%s1 + $0x498] sm:$0xff]
    %v181 = vld [vmem:[%s1 + $0x4a0] sm:$0xff]
    %v182 = vld [vmem:[%s1 + $0x4a8] sm:$0xff]
    %v183 = vld [vmem:[%s1 + $0x4b0] sm:$0xff]
    %v184 = vld [vmem:[%s1 + $0x4b8] sm:$0xff]
    %v185 = vld [vmem:[%s1 + $0x4c0] sm:$0xff]
    %v186 = vld [vmem:[%s1 + $0x4c8] sm:$0xff]
    %v187 = vld [vmem:[%s1 + $0x4d0] sm:$0xff]
    %v188 = vld [vmem:[%s1 + $0x4d8] sm:$0xff]
    %v189 = vld [vmem:[%s1 + $0x4e0] sm:$0xff]
    %v190 = vld [vmem:[%s1 + $0x4e8] sm:$0xff]
    %v191 = vld [vmem:[%s1 + $0x4f0] sm:$0xff]
    %v192 = vld [vmem:[%s1 + $0x4f8] sm:$0xff]
    %v193 = vld [vmem:[%s1 + $0x500] sm:$0xff]
    %v194 = vld [vmem:[%s1 + $0x508] sm:$0xff]
    %v195 = vld [vmem:[%s1 + $0x510] sm:$0xff]
    %v196 = vld [vmem:[%s1 + $0x518] sm:$0xff]
    %v197 = vld [vmem:[%s1 + $0x520] sm:$0xff]
    %v198 = vld [vmem:[%s1 + $0x528] sm:$0xff]
    %v199 = vld [vmem:[%s1 + $0x530] sm:$0xff]
    %v200 = vld [vmem:[%s1 + $0x538] sm:$0xff]
    %v201 = vld [vmem:[%s1 + $0x540] sm:$0xff]
    %v202 = vld [vmem:[%s1 + $0x548] sm:$0xff]
    %v203 = vld [vmem:[%s1 + $0x550] sm:$0xff]
    %v204 = vld [vmem:[%s1 + $0x558] sm:$0xff]
    %v205 = vld [vmem:[%s1 + $0x560] sm:$0xff]
    %v206 = vld [vmem:[%s1 + $0x568] sm:$0xff]
    %v207 = vld [vmem:[%s1 + $0x570] sm:$0xff]
    %v208 = vld [vmem:[%s1 + $0x578] sm:$0xff]
    %v209 = vld [vmem:[%s1 + $0x580] sm:$0xff]
    %v210 = vld [vmem:[%s1 + $0x588] sm:$0xff]
    %v211 = vld [vmem:[%s1 + $0x590] sm:$0xff]
    %v212 = vld [vmem:[%s1 + $0x598] sm:$0xff]
    %v213 = vld [vmem:[%s1 + $0x5a0] sm:$0xff]
    %v214 = vld [vmem:[%s1 + $0x5a8] sm:$0xff]
    %v215 = vld [vmem:[%s1 + $0x5b0] sm:$0xff]
    %v216 = vld [vmem:[%s1 + $0x5b8] sm:$0xff]
    %v217 = vld [vmem:[%s1 + $0x5c0] sm:$0xff]
    %v218 = vld [vmem:[%s1 + $0x5c8] sm:$0xff]
    %v219 = vld [vmem:[%s1 + $0x5d0] sm:$0xff]
    %v220 = vld [vmem:[%s1 + $0x5d8] sm:$0xff]
    %v221 = vld [vmem:[%s1 + $0x5e0] sm:$0xff]
    %v222 = vld [vmem:[%s1 + $0x5e8] sm:$0xff]
    %v223 = vld [vmem:[%s1 + $0x5f0] sm:$0xff]
    %v224 = vld [vmem:[%s1 + $0x5f8] sm:$0xff]
    %v225 = vld [vmem:[%s2] sm:$0x3]
    %v227 = vlaneseq
    %v228 = vshrl.u32 %v227, 7
    %v229 = vsub.s32 0, %v228
    %v230 = vrot.slane %v225, %v229
    %v231 = vlaneseq
    %v232 = vshrl.u32 %v231, 7
    %v233 = vsub.s32 1, %v232
    %v234 = vrot.slane %v225, %v233
    %237 = vmatprep.subr.mxu0 %v34
    %238 = vmatpush1.msra.mxu0 %v33
    %239 = vmatprep.subr.mxu0 %v36
    %240 = vmatpush1.msra.mxu0 %v35
    %241 = vmatprep.subr.mxu0 %v38
    %242 = vmatpush1.msra.mxu0 %v37
    %243 = vmatprep.subr.mxu0 %v40
    %244 = vmatpush1.msra.mxu0 %v39
    %245 = vmatprep.subr.mxu0 %v42
    %246 = vmatpush1.msra.mxu0 %v41
    %247 = vmatprep.subr.mxu0 %v44
    %248 = vmatpush1.msra.mxu0 %v43
    %249 = vmatprep.subr.mxu0 %v46
    %250 = vmatpush1.msra.mxu0 %v45
    %251 = vmatprep.subr.mxu0 %v48
    %252 = vmatpush1.msra.mxu0 %v47
    %253 = vmatprep.subr.mxu0 %v50
    %254 = vmatpush1.msra.mxu0 %v49
    %255 = vmatprep.subr.mxu0 %v52
    %256 = vmatpush1.msra.mxu0 %v51
    %257 = vmatprep.subr.mxu0 %v54
    %258 = vmatpush1.msra.mxu0 %v53
    %259 = vmatprep.subr.mxu0 %v56
    %260 = vmatpush1.msra.mxu0 %v55
    %261 = vmatprep.subr.mxu0 %v58
    %262 = vmatpush1.msra.mxu0 %v57
    %263 = vmatprep.subr.mxu0 %v60
    %264 = vmatpush1.msra.mxu0 %v59
    %265 = vmatprep.subr.mxu0 %v62
    %266 = vmatpush1.msra.mxu0 %v61
    %267 = vmatprep.subr.mxu0 %v64
    %268 = vmatpush1.msra.mxu0 %v63
    %269 = vmatprep.subr.mxu0 %v66
    %270 = vmatpush1.msra.mxu0 %v65
    %271 = vmatprep.subr.mxu0 %v68
    %272 = vmatpush1.msra.mxu0 %v67
    %273 = vmatprep.subr.mxu0 %v70
    %274 = vmatpush1.msra.mxu0 %v69
    %275 = vmatprep.subr.mxu0 %v72
    %276 = vmatpush1.msra.mxu0 %v71
    %277 = vmatprep.subr.mxu0 %v74
    %278 = vmatpush1.msra.mxu0 %v73
    %279 = vmatprep.subr.mxu0 %v76
    %280 = vmatpush1.msra.mxu0 %v75
    %281 = vmatprep.subr.mxu0 %v78
    %282 = vmatpush1.msra.mxu0 %v77
    %283 = vmatprep.subr.mxu0 %v80
    %284 = vmatpush1.msra.mxu0 %v79
    %285 = vmatprep.subr.mxu0 %v82
    %286 = vmatpush1.msra.mxu0 %v81
    %287 = vmatprep.subr.mxu0 %v84
    %288 = vmatpush1.msra.mxu0 %v83
    %289 = vmatprep.subr.mxu0 %v86
    %290 = vmatpush1.msra.mxu0 %v85
    %291 = vmatprep.subr.mxu0 %v88
    %292 = vmatpush1.msra.mxu0 %v87
    %293 = vmatprep.subr.mxu0 %v90
    %294 = vmatpush1.msra.mxu0 %v89
    %295 = vmatprep.subr.mxu0 %v92
    %296 = vmatpush1.msra.mxu0 %v91
    %297 = vmatprep.subr.mxu0 %v94
    %298 = vmatpush1.msra.mxu0 %v93
    %299 = vmatprep.subr.mxu0 %v96
    %300 = vmatpush1.msra.mxu0 %v95
    %301 = vmatprep.mubr.f32.mxu0 %v22
    %302 = vmatmul.mubr.f32.gmra.mrb[0].mxu0 %v21
    %v303 = vpop.f32.mrb[0].mxu0
    %v304 = vadd.f32 %v230, %v303
    %v305 = vpop.f32.mrb[0].mxu0
    %v306 = vadd.f32 %v234, %v305
    %307 = vmatprep.mubr.f32.mxu0 %v28
    %308 = vmatmul.mubr.f32.gmra.mrb[0].mxu0 %v27
    %v309 = vpop.f32.mrb[0].mxu0
    %v310 = vadd.f32 %v230, %v309
    %v311 = vpop.f32.mrb[0].mxu0
    %v312 = vadd.f32 %v234, %v311
    %313 = vdwg.mxu0
    %314 = vmatprep.subr.mxu0 %v98
    %315 = vmatpush1.msra.mxu0 %v97
    %316 = vmatprep.subr.mxu0 %v100
    %317 = vmatpush1.msra.mxu0 %v99
    %318 = vmatprep.subr.mxu0 %v102
    %319 = vmatpush1.msra.mxu0 %v101
    %320 = vmatprep.subr.mxu0 %v104
    %321 = vmatpush1.msra.mxu0 %v103
    %322 = vmatprep.subr.mxu0 %v106
    %323 = vmatpush1.msra.mxu0 %v105
    %324 = vmatprep.subr.mxu0 %v108
    %325 = vmatpush1.msra.mxu0 %v107
    %326 = vmatprep.subr.mxu0 %v110
    %327 = vmatpush1.msra.mxu0 %v109
    %328 = vmatprep.subr.mxu0 %v112
    %329 = vmatpush1.msra.mxu0 %v111
    %330 = vmatprep.subr.mxu0 %v114
    %331 = vmatpush1.msra.mxu0 %v113
    %332 = vmatprep.subr.mxu0 %v116
    %333 = vmatpush1.msra.mxu0 %v115
    %334 = vmatprep.subr.mxu0 %v118
    %335 = vmatpush1.msra.mxu0 %v117
    %336 = vmatprep.subr.mxu0 %v120
    %337 = vmatpush1.msra.mxu0 %v119
    %338 = vmatprep.subr.mxu0 %v122
    %339 = vmatpush1.msra.mxu0 %v121
    %340 = vmatprep.subr.mxu0 %v124
    %341 = vmatpush1.msra.mxu0 %v123
    %342 = vmatprep.subr.mxu0 %v126
    %343 = vmatpush1.msra.mxu0 %v125
    %344 = vmatprep.subr.mxu0 %v128
    %345 = vmatpush1.msra.mxu0 %v127
    %346 = vmatprep.subr.mxu0 %v130
    %347 = vmatpush1.msra.mxu0 %v129
    %348 = vmatprep.subr.mxu0 %v132
    %349 = vmatpush1.msra.mxu0 %v131
    %350 = vmatprep.subr.mxu0 %v134
    %351 = vmatpush1.msra.mxu0 %v133
    %352 = vmatprep.subr.mxu0 %v136
    %353 = vmatpush1.msra.mxu0 %v135
    %354 = vmatprep.subr.mxu0 %v138
    %355 = vmatpush1.msra.mxu0 %v137
    %356 = vmatprep.subr.mxu0 %v140
    %357 = vmatpush1.msra.mxu0 %v139
    %358 = vmatprep.subr.mxu0 %v142
    %359 = vmatpush1.msra.mxu0 %v141
    %360 = vmatprep.subr.mxu0 %v144
    %361 = vmatpush1.msra.mxu0 %v143
    %362 = vmatprep.subr.mxu0 %v146
    %363 = vmatpush1.msra.mxu0 %v145
    %364 = vmatprep.subr.mxu0 %v148
    %365 = vmatpush1.msra.mxu0 %v147
    %366 = vmatprep.subr.mxu0 %v150
    %367 = vmatpush1.msra.mxu0 %v149
    %368 = vmatprep.subr.mxu0 %v152
    %369 = vmatpush1.msra.mxu0 %v151
    %370 = vmatprep.subr.mxu0 %v154
    %371 = vmatpush1.msra.mxu0 %v153
    %372 = vmatprep.subr.mxu0 %v156
    %373 = vmatpush1.msra.mxu0 %v155
    %374 = vmatprep.subr.mxu0 %v158
    %375 = vmatpush1.msra.mxu0 %v157
    %376 = vmatprep.subr.mxu0 %v160
    %377 = vmatpush1.msra.mxu0 %v159
    %378 = vmatprep.mubr.f32.mxu0 %v24
    %379 = vmatmul.mubr.f32.gmra.mrb[0].mxu0 %v23
    %v380 = vpop.f32.mrb[0].mxu0
    %v381 = vadd.f32 %v304, %v380
    %v382 = vpop.f32.mrb[0].mxu0
    %v383 = vadd.f32 %v306, %v382
    %384 = vmatprep.mubr.f32.mxu0 %v30
    %385 = vmatmul.mubr.f32.gmra.mrb[0].mxu0 %v29
    %v386 = vpop.f32.mrb[0].mxu0
    %v387 = vadd.f32 %v310, %v386
    %v388 = vpop.f32.mrb[0].mxu0
    %v389 = vadd.f32 %v312, %v388
    %390 = vdwg.mxu0
    %391 = vmatprep.subr.mxu0 %v162
    %392 = vmatpush1.msra.mxu0 %v161
    %393 = vmatprep.subr.mxu0 %v164
    %394 = vmatpush1.msra.mxu0 %v163
    %395 = vmatprep.subr.mxu0 %v166
    %396 = vmatpush1.msra.mxu0 %v165
    %397 = vmatprep.subr.mxu0 %v168
    %398 = vmatpush1.msra.mxu0 %v167
    %399 = vmatprep.subr.mxu0 %v170
    %400 = vmatpush1.msra.mxu0 %v169
    %401 = vmatprep.subr.mxu0 %v172
    %402 = vmatpush1.msra.mxu0 %v171
    %403 = vmatprep.subr.mxu0 %v174
    %404 = vmatpush1.msra.mxu0 %v173
    %405 = vmatprep.subr.mxu0 %v176
    %406 = vmatpush1.msra.mxu0 %v175
    %407 = vmatprep.subr.mxu0 %v178
    %408 = vmatpush1.msra.mxu0 %v177
    %409 = vmatprep.subr.mxu0 %v180
    %410 = vmatpush1.msra.mxu0 %v179
    %411 = vmatprep.subr.mxu0 %v182
    %412 = vmatpush1.msra.mxu0 %v181
    %413 = vmatprep.subr.mxu0 %v184
    %414 = vmatpush1.msra.mxu0 %v183
    %415 = vmatprep.subr.mxu0 %v186
    %416 = vmatpush1.msra.mxu0 %v185
    %417 = vmatprep.subr.mxu0 %v188
    %418 = vmatpush1.msra.mxu0 %v187
    %419 = vmatprep.subr.mxu0 %v190
    %420 = vmatpush1.msra.mxu0 %v189
    %421 = vmatprep.subr.mxu0 %v192
    %422 = vmatpush1.msra.mxu0 %v191
    %423 = vmatprep.subr.mxu0 %v194
    %424 = vmatpush1.msra.mxu0 %v193
    %425 = vmatprep.subr.mxu0 %v196
    %426 = vmatpush1.msra.mxu0 %v195
    %427 = vmatprep.subr.mxu0 %v198
    %428 = vmatpush1.msra.mxu0 %v197
    %429 = vmatprep.subr.mxu0 %v200
    %430 = vmatpush1.msra.mxu0 %v199
    %431 = vmatprep.subr.mxu0 %v202
    %432 = vmatpush1.msra.mxu0 %v201
    %433 = vmatprep.subr.mxu0 %v204
    %434 = vmatpush1.msra.mxu0 %v203
    %435 = vmatprep.subr.mxu0 %v206
    %436 = vmatpush1.msra.mxu0 %v205
    %437 = vmatprep.subr.mxu0 %v208
    %438 = vmatpush1.msra.mxu0 %v207
    %439 = vmatprep.subr.mxu0 %v210
    %440 = vmatpush1.msra.mxu0 %v209
    %441 = vmatprep.subr.mxu0 %v212
    %442 = vmatpush1.msra.mxu0 %v211
    %443 = vmatprep.subr.mxu0 %v214
    %444 = vmatpush1.msra.mxu0 %v213
    %445 = vmatprep.subr.mxu0 %v216
    %446 = vmatpush1.msra.mxu0 %v215
    %447 = vmatprep.subr.mxu0 %v218
    %448 = vmatpush1.msra.mxu0 %v217
    %449 = vmatprep.subr.mxu0 %v220
    %450 = vmatpush1.msra.mxu0 %v219
    %451 = vmatprep.subr.mxu0 %v222
    %452 = vmatpush1.msra.mxu0 %v221
    %453 = vmatprep.subr.mxu0 %v224
    %454 = vmatpush1.msra.mxu0 %v223
    %455 = vmatprep.mubr.f32.mxu0 %v26
    %456 = vmatmul.mubr.f32.gmra.mrb[0].mxu0 %v25
    %v457 = vpop.f32.mrb[0].mxu0
    %v458 = vadd.f32 %v381, %v457
    %v459 = vpop.f32.mrb[0].mxu0
    %v460 = vadd.f32 %v383, %v459
    %461 = vmatprep.mubr.f32.mxu0 %v32
    %462 = vmatmul.mubr.f32.gmra.mrb[0].mxu0 %v31
    %v463 = vpop.f32.mrb[0].mxu0
    %v464 = vadd.f32 %v387, %v463
    %v465 = vpop.f32.mrb[0].mxu0
    %v466 = vadd.f32 %v389, %v465
    %467 = vdwg.mxu0
    %v468 = vmax.f32 %v458, 0.0
    %v469 = vmax.f32 %v460, 0.0
    %v470 = vmax.f32 %v464, 0.0
    %v471 = vmax.f32 %v466, 0.0
    %v472 = vld [vmem:[%s3] sm:$0xff]
    %v473 = vld [vmem:[%s3 + $0x8] sm:$0xff]
    %v474 = vld [vmem:[%s3 + $0x10] sm:$0xff]
    %v475 = vld [vmem:[%s3 + $0x18] sm:$0xff]
    %v476 = vld [vmem:[%s3 + $0x20] sm:$0xff]
    %v477 = vld [vmem:[%s3 + $0x28] sm:$0xff]
    %v478 = vld [vmem:[%s3 + $0x30] sm:$0xff]
    %v479 = vld [vmem:[%s3 + $0x38] sm:$0xff]
    %v480 = vld [vmem:[%s3 + $0x40] sm:$0xff]
    %v481 = vld [vmem:[%s3 + $0x48] sm:$0xff]
    %v482 = vld [vmem:[%s3 + $0x50] sm:$0xff]
    %v483 = vld [vmem:[%s3 + $0x58] sm:$0xff]
    %v484 = vld [vmem:[%s3 + $0x60] sm:$0xff]
    %v485 = vld [vmem:[%s3 + $0x68] sm:$0xff]
    %v486 = vld [vmem:[%s3 + $0x70] sm:$0xff]
    %v487 = vld [vmem:[%s3 + $0x78] sm:$0xff]
    %v488 = vld [vmem:[%s3 + $0x80] sm:$0xff]
    %v489 = vld [vmem:[%s3 + $0x88] sm:$0xff]
    %v490 = vld [vmem:[%s3 + $0x90] sm:$0xff]
    %v491 = vld [vmem:[%s3 + $0x98] sm:$0xff]
    %v492 = vld [vmem:[%s3 + $0xa0] sm:$0xff]
    %v493 = vld [vmem:[%s3 + $0xa8] sm:$0xff]
    %v494 = vld [vmem:[%s3 + $0xb0] sm:$0xff]
    %v495 = vld [vmem:[%s3 + $0xb8] sm:$0xff]
    %v496 = vld [vmem:[%s3 + $0xc0] sm:$0xff]
    %v497 = vld [vmem:[%s3 + $0xc8] sm:$0xff]
    %v498 = vld [vmem:[%s3 + $0xd0] sm:$0xff]
    %v499 = vld [vmem:[%s3 + $0xd8] sm:$0xff]
    %v500 = vld [vmem:[%s3 + $0xe0] sm:$0xff]
    %v501 = vld [vmem:[%s3 + $0xe8] sm:$0xff]
    %v502 = vld [vmem:[%s3 + $0xf0] sm:$0xff]
    %v503 = vld [vmem:[%s3 + $0xf8] sm:$0xff]
    %v504 = vld [vmem:[%s3 + $0x100] sm:$0xff]
    %v505 = vld [vmem:[%s3 + $0x108] sm:$0xff]
    %v506 = vld [vmem:[%s3 + $0x110] sm:$0xff]
    %v507 = vld [vmem:[%s3 + $0x118] sm:$0xff]
    %v508 = vld [vmem:[%s3 + $0x120] sm:$0xff]
    %v509 = vld [vmem:[%s3 + $0x128] sm:$0xff]
    %v510 = vld [vmem:[%s3 + $0x130] sm:$0xff]
    %v511 = vld [vmem:[%s3 + $0x138] sm:$0xff]
    %v512 = vld [vmem:[%s3 + $0x140] sm:$0xff]
    %v513 = vld [vmem:[%s3 + $0x148] sm:$0xff]
    %v514 = vld [vmem:[%s3 + $0x150] sm:$0xff]
    %v515 = vld [vmem:[%s3 + $0x158] sm:$0xff]
    %v516 = vld [vmem:[%s3 + $0x160] sm:$0xff]
    %v517 = vld [vmem:[%s3 + $0x168] sm:$0xff]
    %v518 = vld [vmem:[%s3 + $0x170] sm:$0xff]
    %v519 = vld [vmem:[%s3 + $0x178] sm:$0xff]
    %v520 = vld [vmem:[%s3 + $0x180] sm:$0xff]
    %v521 = vld [vmem:[%s3 + $0x188] sm:$0xff]
    %v522 = vld [vmem:[%s3 + $0x190] sm:$0xff]
    %v523 = vld [vmem:[%s3 + $0x198] sm:$0xff]
    %v524 = vld [vmem:[%s3 + $0x1a0] sm:$0xff]
    %v525 = vld [vmem:[%s3 + $0x1a8] sm:$0xff]
    %v526 = vld [vmem:[%s3 + $0x1b0] sm:$0xff]
    %v527 = vld [vmem:[%s3 + $0x1b8] sm:$0xff]
    %v528 = vld [vmem:[%s3 + $0x1c0] sm:$0xff]
    %v529 = vld [vmem:[%s3 + $0x1c8] sm:$0xff]
    %v530 = vld [vmem:[%s3 + $0x1d0] sm:$0xff]
    %v531 = vld [vmem:[%s3 + $0x1d8] sm:$0xff]
    %v532 = vld [vmem:[%s3 + $0x1e0] sm:$0xff]
    %v533 = vld [vmem:[%s3 + $0x1e8] sm:$0xff]
    %v534 = vld [vmem:[%s3 + $0x1f0] sm:$0xff]
    %v535 = vld [vmem:[%s3 + $0x1f8] sm:$0xff]
    %v536 = vld [vmem:[%s3 + $0x200] sm:$0xff]
    %v537 = vld [vmem:[%s3 + $0x208] sm:$0xff]
    %v538 = vld [vmem:[%s3 + $0x210] sm:$0xff]
    %v539 = vld [vmem:[%s3 + $0x218] sm:$0xff]
    %v540 = vld [vmem:[%s3 + $0x220] sm:$0xff]
    %v541 = vld [vmem:[%s3 + $0x228] sm:$0xff]
    %v542 = vld [vmem:[%s3 + $0x230] sm:$0xff]
    %v543 = vld [vmem:[%s3 + $0x238] sm:$0xff]
    %v544 = vld [vmem:[%s3 + $0x240] sm:$0xff]
    %v545 = vld [vmem:[%s3 + $0x248] sm:$0xff]
    %v546 = vld [vmem:[%s3 + $0x250] sm:$0xff]
    %v547 = vld [vmem:[%s3 + $0x258] sm:$0xff]
    %v548 = vld [vmem:[%s3 + $0x260] sm:$0xff]
    %v549 = vld [vmem:[%s3 + $0x268] sm:$0xff]
    %v550 = vld [vmem:[%s3 + $0x270] sm:$0xff]
    %v551 = vld [vmem:[%s3 + $0x278] sm:$0xff]
    %v552 = vld [vmem:[%s3 + $0x280] sm:$0xff]
    %v553 = vld [vmem:[%s3 + $0x288] sm:$0xff]
    %v554 = vld [vmem:[%s3 + $0x290] sm:$0xff]
    %v555 = vld [vmem:[%s3 + $0x298] sm:$0xff]
    %v556 = vld [vmem:[%s3 + $0x2a0] sm:$0xff]
    %v557 = vld [vmem:[%s3 + $0x2a8] sm:$0xff]
    %v558 = vld [vmem:[%s3 + $0x2b0] sm:$0xff]
    %v559 = vld [vmem:[%s3 + $0x2b8] sm:$0xff]
    %v560 = vld [vmem:[%s3 + $0x2c0] sm:$0xff]
    %v561 = vld [vmem:[%s3 + $0x2c8] sm:$0xff]
    %v562 = vld [vmem:[%s3 + $0x2d0] sm:$0xff]
    %v563 = vld [vmem:[%s3 + $0x2d8] sm:$0xff]
    %v564 = vld [vmem:[%s3 + $0x2e0] sm:$0xff]
    %v565 = vld [vmem:[%s3 + $0x2e8] sm:$0xff]
    %v566 = vld [vmem:[%s3 + $0x2f0] sm:$0xff]
    %v567 = vld [vmem:[%s3 + $0x2f8] sm:$0xff]
    %v568 = vld [vmem:[%s3 + $0x300] sm:$0xff]
    %v569 = vld [vmem:[%s3 + $0x308] sm:$0xff]
    %v570 = vld [vmem:[%s3 + $0x310] sm:$0xff]
    %v571 = vld [vmem:[%s3 + $0x318] sm:$0xff]
    %v572 = vld [vmem:[%s3 + $0x320] sm:$0xff]
    %v573 = vld [vmem:[%s3 + $0x328] sm:$0xff]
    %v574 = vld [vmem:[%s3 + $0x330] sm:$0xff]
    %v575 = vld [vmem:[%s3 + $0x338] sm:$0xff]
    %v576 = vld [vmem:[%s3 + $0x340] sm:$0xff]
    %v577 = vld [vmem:[%s3 + $0x348] sm:$0xff]
    %v578 = vld [vmem:[%s3 + $0x350] sm:$0xff]
    %v579 = vld [vmem:[%s3 + $0x358] sm:$0xff]
    %v580 = vld [vmem:[%s3 + $0x360] sm:$0xff]
    %v581 = vld [vmem:[%s3 + $0x368] sm:$0xff]
    %v582 = vld [vmem:[%s3 + $0x370] sm:$0xff]
    %v583 = vld [vmem:[%s3 + $0x378] sm:$0xff]
    %v584 = vld [vmem:[%s3 + $0x380] sm:$0xff]
    %v585 = vld [vmem:[%s3 + $0x388] sm:$0xff]
    %v586 = vld [vmem:[%s3 + $0x390] sm:$0xff]
    %v587 = vld [vmem:[%s3 + $0x398] sm:$0xff]
    %v588 = vld [vmem:[%s3 + $0x3a0] sm:$0xff]
    %v589 = vld [vmem:[%s3 + $0x3a8] sm:$0xff]
    %v590 = vld [vmem:[%s3 + $0x3b0] sm:$0xff]
    %v591 = vld [vmem:[%s3 + $0x3b8] sm:$0xff]
    %v592 = vld [vmem:[%s3 + $0x3c0] sm:$0xff]
    %v593 = vld [vmem:[%s3 + $0x3c8] sm:$0xff]
    %v594 = vld [vmem:[%s3 + $0x3d0] sm:$0xff]
    %v595 = vld [vmem:[%s3 + $0x3d8] sm:$0xff]
    %v596 = vld [vmem:[%s3 + $0x3e0] sm:$0xff]
    %v597 = vld [vmem:[%s3 + $0x3e8] sm:$0xff]
    %v598 = vld [vmem:[%s3 + $0x3f0] sm:$0xff]
    %v599 = vld [vmem:[%s3 + $0x3f8] sm:$0xff]
    %v600 = vld [vmem:[%s3 + $0x400] sm:$0xff]
    %v601 = vld [vmem:[%s3 + $0x408] sm:$0xff]
    %v602 = vld [vmem:[%s3 + $0x410] sm:$0xff]
    %v603 = vld [vmem:[%s3 + $0x418] sm:$0xff]
    %v604 = vld [vmem:[%s3 + $0x420] sm:$0xff]
    %v605 = vld [vmem:[%s3 + $0x428] sm:$0xff]
    %v606 = vld [vmem:[%s3 + $0x430] sm:$0xff]
    %v607 = vld [vmem:[%s3 + $0x438] sm:$0xff]
    %v608 = vld [vmem:[%s3 + $0x440] sm:$0xff]
    %v609 = vld [vmem:[%s3 + $0x448] sm:$0xff]
    %v610 = vld [vmem:[%s3 + $0x450] sm:$0xff]
    %v611 = vld [vmem:[%s3 + $0x458] sm:$0xff]
    %v612 = vld [vmem:[%s3 + $0x460] sm:$0xff]
    %v613 = vld [vmem:[%s3 + $0x468] sm:$0xff]
    %v614 = vld [vmem:[%s3 + $0x470] sm:$0xff]
    %v615 = vld [vmem:[%s3 + $0x478] sm:$0xff]
    %v616 = vld [vmem:[%s4] sm:$0x3f]
    %v618 = vlaneseq
    %v619 = vshrl.u32 %v618, 7
    %v620 = vsub.s32 0, %v619
    %v621 = vrot.slane %v616, %v620
    %v622 = vlaneseq
    %v623 = vshrl.u32 %v622, 7
    %v624 = vsub.s32 1, %v623
    %v625 = vrot.slane %v616, %v624
    %v626 = vlaneseq
    %v627 = vshrl.u32 %v626, 7
    %v628 = vsub.s32 2, %v627
    %v629 = vrot.slane %v616, %v628
    %v630 = vlaneseq
    %v631 = vshrl.u32 %v630, 7
    %v632 = vsub.s32 3, %v631
    %v633 = vrot.slane %v616, %v632
    %v634 = vlaneseq
    %v635 = vshrl.u32 %v634, 7
    %v636 = vsub.s32 4, %v635
    %v637 = vrot.slane %v616, %v636
    %v638 = vlaneseq
    %v639 = vshrl.u32 %v638, 7
    %v640 = vsub.s32 5, %v639
    %v641 = vrot.slane %v616, %v640
    %vm648 = vcmask 523264
    %v650 = vsel %vm648, %v469, 0
    %v653 = vsel %vm648, %v471, 0
    %655 = vmatprep.subr.mxu0 %v473
    %656 = vmatpush1.msra.mxu0 %v472
    %657 = vmatprep.subr.mxu0 %v479
    %658 = vmatpush1.msra.mxu0 %v478
    %659 = vmatprep.subr.mxu0 %v485
    %660 = vmatpush1.msra.mxu0 %v484
    %661 = vmatprep.subr.mxu0 %v491
    %662 = vmatpush1.msra.mxu0 %v490
    %663 = vmatprep.subr.mxu0 %v497
    %664 = vmatpush1.msra.mxu0 %v496
    %665 = vmatprep.subr.mxu0 %v503
    %666 = vmatpush1.msra.mxu0 %v502
    %667 = vmatprep.subr.mxu0 %v509
    %668 = vmatpush1.msra.mxu0 %v508
    %669 = vmatprep.subr.mxu0 %v515
    %670 = vmatpush1.msra.mxu0 %v514
    %671 = vmatprep.subr.mxu0 %v521
    %672 = vmatpush1.msra.mxu0 %v520
    %673 = vmatprep.subr.mxu0 %v527
    %674 = vmatpush1.msra.mxu0 %v526
    %675 = vmatprep.subr.mxu0 %v533
    %676 = vmatpush1.msra.mxu0 %v532
    %677 = vmatprep.subr.mxu0 %v539
    %678 = vmatpush1.msra.mxu0 %v538
    %679 = vmatprep.subr.mxu0 %v545
    %680 = vmatpush1.msra.mxu0 %v544
    %681 = vmatprep.subr.mxu0 %v551
    %682 = vmatpush1.msra.mxu0 %v550
    %683 = vmatprep.subr.mxu0 %v557
    %684 = vmatpush1.msra.mxu0 %v556
    %685 = vmatprep.subr.mxu0 %v563
    %686 = vmatpush1.msra.mxu0 %v562
    %687 = vmatprep.subr.mxu0 %v569
    %688 = vmatpush1.msra.mxu0 %v568
    %689 = vmatprep.subr.mxu0 %v575
    %690 = vmatpush1.msra.mxu0 %v574
    %691 = vmatprep.subr.mxu0 %v581
    %692 = vmatpush1.msra.mxu0 %v580
    %693 = vmatprep.subr.mxu0 %v587
    %694 = vmatpush1.msra.mxu0 %v586
    %695 = vmatprep.subr.mxu0 %v593
    %696 = vmatpush1.msra.mxu0 %v592
    %697 = vmatprep.subr.mxu0 %v599
    %698 = vmatpush1.msra.mxu0 %v598
    %699 = vmatprep.subr.mxu0 %v605
    %700 = vmatpush1.msra.mxu0 %v604
    %701 = vmatprep.subr.mxu0 %v611
    %702 = vmatpush1.msra.mxu0 %v610
    %703 = vmatprep.subr.mxu0 0.0
    %704 = vmatpush1.msra.mxu0 0.0
    %705 = vmatprep.subr.mxu0 0.0
    %706 = vmatpush1.msra.mxu0 0.0
    %707 = vmatprep.subr.mxu0 0.0
    %708 = vmatpush1.msra.mxu0 0.0
    %709 = vmatprep.subr.mxu0 0.0
    %710 = vmatpush1.msra.mxu0 0.0
    %711 = vmatprep.subr.mxu0 0.0
    %712 = vmatpush1.msra.mxu0 0.0
    %713 = vmatprep.subr.mxu0 0.0
    %714 = vmatpush1.msra.mxu0 0.0
    %715 = vmatprep.subr.mxu0 0.0
    %716 = vmatpush1.msra.mxu0 0.0
    %717 = vmatprep.subr.mxu0 0.0
    %718 = vmatpush1.msra.mxu0 0.0
    %719 = vmatprep.mubr.f32.mxu0 %v650
    %720 = vmatmul.mubr.f32.gmra.mrb[0].mxu0 %v468
    %v721 = vpop.f32.mrb[0].mxu0
    %v722 = vadd.f32 %v621, %v721
    %v723 = vpop.f32.mrb[0].mxu0
    %v724 = vadd.f32 %v625, %v723
    %725 = vmatprep.mubr.f32.mxu0 %v653
    %726 = vmatmul.mubr.f32.gmra.mrb[0].mxu0 %v470
    %v727 = vpop.f32.mrb[0].mxu0
    %v728 = vadd.f32 %v621, %v727
    %v729 = vpop.f32.mrb[0].mxu0
    %v730 = vadd.f32 %v625, %v729
    %731 = vdwg.mxu0
    %732 = vmatprep.subr.mxu0 %v475
    %733 = vmatpush1.msra.mxu0 %v474
    %734 = vmatprep.subr.mxu0 %v481
    %735 = vmatpush1.msra.mxu0 %v480
    %736 = vmatprep.subr.mxu0 %v487
    %737 = vmatpush1.msra.mxu0 %v486
    %738 = vmatprep.subr.mxu0 %v493
    %739 = vmatpush1.msra.mxu0 %v492
    %740 = vmatprep.subr.mxu0 %v499
    %741 = vmatpush1.msra.mxu0 %v498
    %742 = vmatprep.subr.mxu0 %v505
    %743 = vmatpush1.msra.mxu0 %v504
    %744 = vmatprep.subr.mxu0 %v511
    %745 = vmatpush1.msra.mxu0 %v510
    %746 = vmatprep.subr.mxu0 %v517
    %747 = vmatpush1.msra.mxu0 %v516
    %748 = vmatprep.subr.mxu0 %v523
    %749 = vmatpush1.msra.mxu0 %v522
    %750 = vmatprep.subr.mxu0 %v529
    %751 = vmatpush1.msra.mxu0 %v528
    %752 = vmatprep.subr.mxu0 %v535
    %753 = vmatpush1.msra.mxu0 %v534
    %754 = vmatprep.subr.mxu0 %v541
    %755 = vmatpush1.msra.mxu0 %v540
    %756 = vmatprep.subr.mxu0 %v547
    %757 = vmatpush1.msra.mxu0 %v546
    %758 = vmatprep.subr.mxu0 %v553
    %759 = vmatpush1.msra.mxu0 %v552
    %760 = vmatprep.subr.mxu0 %v559
    %761 = vmatpush1.msra.mxu0 %v558
    %762 = vmatprep.subr.mxu0 %v565
    %763 = vmatpush1.msra.mxu0 %v564
    %764 = vmatprep.subr.mxu0 %v571
    %765 = vmatpush1.msra.mxu0 %v570
    %766 = vmatprep.subr.mxu0 %v577
    %767 = vmatpush1.msra.mxu0 %v576
    %768 = vmatprep.subr.mxu0 %v583
    %769 = vmatpush1.msra.mxu0 %v582
    %770 = vmatprep.subr.mxu0 %v589
    %771 = vmatpush1.msra.mxu0 %v588
    %772 = vmatprep.subr.mxu0 %v595
    %773 = vmatpush1.msra.mxu0 %v594
    %774 = vmatprep.subr.mxu0 %v601
    %775 = vmatpush1.msra.mxu0 %v600
    %776 = vmatprep.subr.mxu0 %v607
    %777 = vmatpush1.msra.mxu0 %v606
    %778 = vmatprep.subr.mxu0 %v613
    %779 = vmatpush1.msra.mxu0 %v612
    %780 = vmatprep.subr.mxu0 0.0
    %781 = vmatpush1.msra.mxu0 0.0
    %782 = vmatprep.subr.mxu0 0.0
    %783 = vmatpush1.msra.mxu0 0.0
    %784 = vmatprep.subr.mxu0 0.0
    %785 = vmatpush1.msra.mxu0 0.0
    %786 = vmatprep.subr.mxu0 0.0
    %787 = vmatpush1.msra.mxu0 0.0
    %788 = vmatprep.subr.mxu0 0.0
    %789 = vmatpush1.msra.mxu0 0.0
    %790 = vmatprep.subr.mxu0 0.0
    %791 = vmatpush1.msra.mxu0 0.0
    %792 = vmatprep.subr.mxu0 0.0
    %793 = vmatpush1.msra.mxu0 0.0
    %794 = vmatprep.subr.mxu0 0.0
    %795 = vmatpush1.msra.mxu0 0.0
    %796 = vmatprep.mubr.f32.mxu0 %v650
    %797 = vmatmul.mubr.f32.gmra.mrb[0].mxu0 %v468
    %v798 = vpop.f32.mrb[0].mxu0
    %v799 = vadd.f32 %v629, %v798
    %v800 = vpop.f32.mrb[0].mxu0
    %v801 = vadd.f32 %v633, %v800
    %802 = vmatprep.mubr.f32.mxu0 %v653
    %803 = vmatmul.mubr.f32.gmra.mrb[0].mxu0 %v470
    %v804 = vpop.f32.mrb[0].mxu0
    %v805 = vadd.f32 %v629, %v804
    %v806 = vpop.f32.mrb[0].mxu0
    %v807 = vadd.f32 %v633, %v806
    %808 = vdwg.mxu0
    %809 = vmatprep.subr.mxu0 %v477
    %810 = vmatpush1.msra.mxu0 %v476
    %811 = vmatprep.subr.mxu0 %v483
    %812 = vmatpush1.msra.mxu0 %v482
    %813 = vmatprep.subr.mxu0 %v489
    %814 = vmatpush1.msra.mxu0 %v488
    %815 = vmatprep.subr.mxu0 %v495
    %816 = vmatpush1.msra.mxu0 %v494
    %817 = vmatprep.subr.mxu0 %v501
    %818 = vmatpush1.msra.mxu0 %v500
    %819 = vmatprep.subr.mxu0 %v507
    %820 = vmatpush1.msra.mxu0 %v506
    %821 = vmatprep.subr.mxu0 %v513
    %822 = vmatpush1.msra.mxu0 %v512
    %823 = vmatprep.subr.mxu0 %v519
    %824 = vmatpush1.msra.mxu0 %v518
    %825 = vmatprep.subr.mxu0 %v525
    %826 = vmatpush1.msra.mxu0 %v524
    %827 = vmatprep.subr.mxu0 %v531
    %828 = vmatpush1.msra.mxu0 %v530
    %829 = vmatprep.subr.mxu0 %v537
    %830 = vmatpush1.msra.mxu0 %v536
    %831 = vmatprep.subr.mxu0 %v543
    %832 = vmatpush1.msra.mxu0 %v542
    %833 = vmatprep.subr.mxu0 %v549
    %834 = vmatpush1.msra.mxu0 %v548
    %835 = vmatprep.subr.mxu0 %v555
    %836 = vmatpush1.msra.mxu0 %v554
    %837 = vmatprep.subr.mxu0 %v561
    %838 = vmatpush1.msra.mxu0 %v560
    %839 = vmatprep.subr.mxu0 %v567
    %840 = vmatpush1.msra.mxu0 %v566
    %841 = vmatprep.subr.mxu0 %v573
    %842 = vmatpush1.msra.mxu0 %v572
    %843 = vmatprep.subr.mxu0 %v579
    %844 = vmatpush1.msra.mxu0 %v578
    %845 = vmatprep.subr.mxu0 %v585
    %846 = vmatpush1.msra.mxu0 %v584
    %847 = vmatprep.subr.mxu0 %v591
    %848 = vmatpush1.msra.mxu0 %v590
    %849 = vmatprep.subr.mxu0 %v597
    %850 = vmatpush1.msra.mxu0 %v596
    %851 = vmatprep.subr.mxu0 %v603
    %852 = vmatpush1.msra.mxu0 %v602
    %853 = vmatprep.subr.mxu0 %v609
    %854 = vmatpush1.msra.mxu0 %v608
    %855 = vmatprep.subr.mxu0 %v615
    %856 = vmatpush1.msra.mxu0 %v614
    %857 = vmatprep.subr.mxu0 0.0
    %858 = vmatpush1.msra.mxu0 0.0
    %859 = vmatprep.subr.mxu0 0.0
    %860 = vmatpush1.msra.mxu0 0.0
    %861 = vmatprep.subr.mxu0 0.0
    %862 = vmatpush1.msra.mxu0 0.0
    %863 = vmatprep.subr.mxu0 0.0
    %864 = vmatpush1.msra.mxu0 0.0
    %865 = vmatprep.subr.mxu0 0.0
    %866 = vmatpush1.msra.mxu0 0.0
    %867 = vmatprep.subr.mxu0 0.0
    %868 = vmatpush1.msra.mxu0 0.0
    %869 = vmatprep.subr.mxu0 0.0
    %870 = vmatpush1.msra.mxu0 0.0
    %871 = vmatprep.subr.mxu0 0.0
    %872 = vmatpush1.msra.mxu0 0.0
    %873 = vmatprep.mubr.f32.mxu0 %v650
    %874 = vmatmul.mubr.f32.gmra.mrb[0].mxu0 %v468
    %v875 = vpop.f32.mrb[0].mxu0
    %v876 = vadd.f32 %v637, %v875
    %v877 = vpop.f32.mrb[0].mxu0
    %v878 = vadd.f32 %v641, %v877
    %879 = vmatprep.mubr.f32.mxu0 %v653
    %880 = vmatmul.mubr.f32.gmra.mrb[0].mxu0 %v470
    %v881 = vpop.f32.mrb[0].mxu0
    %v882 = vadd.f32 %v637, %v881
    %v883 = vpop.f32.mrb[0].mxu0
    %v884 = vadd.f32 %v641, %v883
    %885 = vdwg.mxu0
    %v886 = vmax.f32 %v722, 0.0
    %v887 = vmax.f32 %v724, 0.0
    %v888 = vmax.f32 %v799, 0.0
    %v889 = vmax.f32 %v801, 0.0
    %v890 = vmax.f32 %v876, 0.0
    %v891 = vmax.f32 %v878, 0.0
    %v892 = vmax.f32 %v728, 0.0
    %v893 = vmax.f32 %v730, 0.0
    %v894 = vmax.f32 %v805, 0.0
    %v895 = vmax.f32 %v807, 0.0
    %v896 = vmax.f32 %v882, 0.0
    %v897 = vmax.f32 %v884, 0.0
    %v898 = vmul.f32 %v21, %v886
    %v899 = vmul.f32 %v22, %v887
    %v900 = vmul.f32 %v23, %v888
    %v901 = vmul.f32 %v24, %v889
    %v902 = vmul.f32 %v25, %v890
    %v903 = vmul.f32 %v26, %v891
    %v904 = vmul.f32 %v27, %v892
    %v905 = vmul.f32 %v28, %v893
    %v906 = vmul.f32 %v29, %v894
    %v907 = vmul.f32 %v30, %v895
    %v908 = vmul.f32 %v31, %v896
    %v909 = vmul.f32 %v32, %v897
    %910 = vst [vmem:[#allocation2] sm:$0xff] %v898
    %911 = vst [vmem:[#allocation2 + $0x8] sm:$0xff] %v899
    %912 = vst [vmem:[#allocation2 + $0x10] sm:$0xff] %v900
    %913 = vst [vmem:[#allocation2 + $0x18] sm:$0xff] %v901
    %914 = vst [vmem:[#allocation2 + $0x20] sm:$0xff] %v902
    %915 = vst [vmem:[#allocation2 + $0x28] sm:$0xff] %v903
    %916 = vst [vmem:[#allocation2 + $0x30] sm:$0xff] %v904
    %917 = vst [vmem:[#allocation2 + $0x38] sm:$0xff] %v905
    %918 = vst [vmem:[#allocation2 + $0x40] sm:$0xff] %v906
    %919 = vst [vmem:[#allocation2 + $0x48] sm:$0xff] %v907
    %920 = vst [vmem:[#allocation2 + $0x50] sm:$0xff] %v908
    %921 = vst [vmem:[#allocation2 + $0x58] sm:$0xff] %v909
    // Predicated region
    $region22: #{tpu_custom_call.1} parent=1 // pred_check
      _
    $region23: #{tpu_custom_call.1} parent=1 // pred_check_branch
      %923 = sbr.rel (0) target = $region25
    $region24: #{tpu_custom_call.1} parent=1 // pred_region
      %s925 = ssub.s32 1536, 1536
      %926 = vsyncadd [#allocation3], %s925
      %s927 = sshll.u32 [#allocation2], 4
      %s928 = int_to_ptr.vmem [resolvable:$true] %s927
      %933 = dma.vmem_to_hbm [thread:$0]  %s928, 1536, %s5, [#allocation3], 768, 768, 48
    $region25: #{tpu_custom_call.1} parent=1 // pred_fallthru
      _
    // Predicated region
    $region26: #{tpu_custom_call.1} parent=1 // pred_check
      _
    $region27: #{tpu_custom_call.1} parent=1 // pred_check_branch
      %935 = sbr.rel (0) target = $region29
    $region28: #{tpu_custom_call.1} parent=1 // pred_region
      %936 = dma.done [#allocation3], 1536
    $region29: #{tpu_custom_call.1} parent=1 // pred_fallthru
      _
    %937 = vsyncpa [#allocation3], 1

</llo_original>
